<compile_context>
chip_gen: v5e
topology: v5e:2x2
jax: 0.10.0
libtpu: 0.0.40
codegen_flags: <defaults>
</compile_context>

<pallas_src>
import functools
import math

import jax
import jax.numpy as jnp
from jax import lax
from jax.experimental import pallas as pl
from jax.experimental.pallas import tpu as pltpu


# ----------------------------- fused kernel --------------------------------


def _mha_kernel(xq_ref, xk_ref, xv_ref, xh_ref,
                wq_ref, bq_ref, wk_ref, bk_ref, wv_ref, bv_ref,
                wug_ref, bug_ref, wd_ref, bd_ref,
                ebias_ref, wo_ref, bo_ref,
                out_ref, ent_ref,
                *, num_heads, d_head, scale, hid_dim):
    f32 = jnp.float32
    xq = xq_ref[0]                       # (S, D)
    xk = xk_ref[0]
    xv = xv_ref[0]
    xh = xh_ref[0]
    S = xq.shape[0]

    # ---- Q/K/V projections (MXU); scale folded into q --------------------
    q = (jnp.dot(xq, wq_ref[...], preferred_element_type=f32) + bq_ref[...]) * scale
    k = jnp.dot(xk, wk_ref[...], preferred_element_type=f32) + bk_ref[...]
    v = jnp.dot(xv, wv_ref[...], preferred_element_type=f32) + bv_ref[...]

    # ---- RoutingNetwork: fused up|gate matmul, pair-softmax via sigmoid ---
    ug = jnp.dot(xh, wug_ref[...], preferred_element_type=f32) + bug_ref[...]
    up = ug[:, :hid_dim]
    gate = ug[:, hid_dim:]
    act = up * jax.nn.sigmoid(up) * gate                         # SiLU(up) * gate
    logits = jnp.dot(act, wd_ref[...], preferred_element_type=f32) + bd_ref[...]
    l0 = logits[:, :num_heads]                                   # (S, H) row-view logit
    l1 = logits[:, num_heads:]                                   # (S, H) col-view logit
    p0 = jax.nn.sigmoid(l0 - l1)                                 # softmax over 2 classes
    p1 = 1.0 - p0
    ent_ref[0] = -(p0 * jnp.log(p0 + 1e-9) + p1 * jnp.log(p1 + 1e-9))

    # ---- attention: causal mask from iota, shared exp across both views ---
    row = lax.broadcasted_iota(jnp.int32, (S, S), 0)
    col = lax.broadcasted_iota(jnp.int32, (S, S), 1)
    keep = col <= row                                            # lower-triangular

    wo = wo_ref[...]                                             # (D, D)
    acc = bo_ref[...]                                            # (1, D) -> broadcasts

    for h in range(num_heads):                                   # static unroll
        sl = slice(h * d_head, (h + 1) * d_head)
        qh, kh, vh = q[:, sl], k[:, sl], v[:, sl]
        eb = ebias_ref[0, h]                                     # exp(position_bias) (S,S)

        s = lax.dot_general(qh, kh, (((1,), (1,)), ((), ())),
                            preferred_element_type=f32)          # (S, S), no k.T copy
        s = jnp.where(keep, s, -1e9)
        m = jnp.max(s, axis=-1, keepdims=True)
        e_col = jnp.exp(s - m)                                   # the only S×S exp
        num_row = e_col * eb                                     # == exp(s + bias - m)
        d_col = jnp.sum(e_col, axis=-1, keepdims=True)
        d_row = jnp.sum(num_row, axis=-1, keepdims=True)

        rw0 = p0[:, h:h + 1]                                     # (S, 1) row-view weight
        coef_col = (1.0 - rw0) / d_col
        coef_row = rw0 / d_row
        p_mix = e_col * coef_col + num_row * coef_row            # blended probabilities

        ctx_h = jnp.dot(p_mix, vh, preferred_element_type=f32)   # (S, d_head)
        acc = acc + jnp.dot(ctx_h, wo[sl, :],                    # fused o_proj accumulate
                            preferred_element_type=f32)

    out_ref[0] = acc                                             # lane-dense (S, D) store


# ----------------------------- wrapper --------------------------------------


def multi_head_attention(params, query, key, value, position_bias_row,
                         hidden_state_for_router, num_heads):
    B, S, D = query.shape
    H = num_heads
    d_head = D // H
    HID = params["wu"].shape[1]
    scale = 1.0 / math.sqrt(d_head)

    # One-time parameter prep (cheap XLA, could be cached outside the step):
    #  - fuse up|gate projections into a single (D, 2*HID) matmul,
    #  - de-interleave down_proj columns so per-head logits are [l0 | l1],
    #  - pre-exponentiate the position bias so the kernel needs one S×S exp.
    wug = jnp.concatenate([params["wu"], params["wg"]], axis=1)
    bug = jnp.concatenate([params["bu"], params["bg"]], axis=1)
    wd, bd = params["wd"], params["bd"]                 # (HID, 2H) interleaved (h, 2)
    wd_re = jnp.concatenate([wd[:, 0::2], wd[:, 1::2]], axis=1)
    bd_re = jnp.concatenate([bd[:, 0::2], bd[:, 1::2]], axis=1)
    exp_bias = jnp.exp(position_bias_row)               # (1, H, S, S)

    kernel = functools.partial(_mha_kernel, num_heads=H, d_head=d_head,
                               scale=scale, hid_dim=HID)

    def act_spec():
        return pl.BlockSpec((1, S, D), lambda b: (b, 0, 0))

    def w_spec(shape):
        return pl.BlockSpec(shape, lambda b: (0, 0))

    out, ent = pl.pallas_call(
        kernel,
        out_shape=(
            jax.ShapeDtypeStruct((B, S, D), jnp.float32),
            jax.ShapeDtypeStruct((B, S, H), jnp.float32),
        ),
        grid=(B,),
        in_specs=[
            act_spec(), act_spec(), act_spec(), act_spec(),          # query,key,value,hidden
            w_spec(params["wq"].shape), w_spec(params["bq"].shape),
            w_spec(params["wk"].shape), w_spec(params["bk"].shape),
            w_spec(params["wv"].shape), w_spec(params["bv"].shape),
            w_spec(wug.shape), w_spec(bug.shape),
            w_spec(wd_re.shape), w_spec(bd_re.shape),
            pl.BlockSpec((1, H, S, S), lambda b: (0, 0, 0, 0)),      # exp(position bias)
            w_spec(params["wo"].shape), w_spec(params["bo"].shape),
        ],
        out_specs=[
            pl.BlockSpec((1, S, D), lambda b: (b, 0, 0)),
            pl.BlockSpec((1, S, H), lambda b: (b, 0, 0)),
        ],
        compiler_params=pltpu.CompilerParams(
            dimension_semantics=("parallel",)),
    )(query, key, value, hidden_state_for_router,
      params["wq"], params["bq"], params["wk"], params["bk"],
      params["wv"], params["bv"], wug, bug, wd_re, bd_re,
      exp_bias, params["wo"], params["bo"])

    entropy_loss = jnp.mean(ent)
    return out, entropy_loss


# ----------------------------- reference (pure JAX) -------------------------


def reference(params, query, key, value, bias, mask, hidden, num_heads):
    B, S, D = query.shape
    dh = D // num_heads

    def lin(x, w, b):
        return x @ w + b

    def sh(x):
        return x.reshape(B, S, num_heads, dh).transpose(0, 2, 1, 3)

    q = sh(lin(query, params["wq"], params["bq"]))
    k = sh(lin(key, params["wk"], params["bk"]))
    v = sh(lin(value, params["wv"], params["bv"]))

    up = lin(hidden, params["wu"], params["bu"])
    gate = lin(hidden, params["wg"], params["bg"])
    act = jax.nn.silu(up) * gate
    logits = lin(act, params["wd"], params["bd"]).reshape(B, S, num_heads, 2)
    rw = jax.nn.softmax(logits, axis=-1)                   # (B,S,H,2)
    ent_loss = jnp.mean(-jnp.sum(rw * jnp.log(rw + 1e-9), axis=-1))
    rw = rw.transpose(0, 2, 1, 3)                          # (B,H,S,2)

    scores = q @ k.transpose(0, 1, 3, 2) / math.sqrt(dh)
    s_row = jnp.where(mask == 0.0, -1e9, scores + bias)
    s_col = jnp.where(mask == 0.0, -1e9, scores)
    c_row = jax.nn.softmax(s_row, axis=-1) @ v
    c_col = jax.nn.softmax(s_col, axis=-1) @ v
    ctx = rw[..., 0:1] * c_row + rw[..., 1:2] * c_col
    ctx = ctx.transpose(0, 2, 1, 3).reshape(B, S, D)
    return lin(ctx, params["wo"], params["bo"]), ent_loss


# ----------------------------- main -----------------------------------------


if __name__ == "__main__":
    B, S, D, H = 2, 8, 32, 4
    HID = D * 4
    key0 = jax.random.PRNGKey(0)
    ks = jax.random.split(key0, 20)

    def rnd(kk, shape, scl=0.05):
        return (scl * jax.random.normal(kk, shape)).astype(jnp.float32)

    params = {
        "wq": rnd(ks[0], (D, D)), "bq": rnd(ks[1], (1, D)),
        "wk": rnd(ks[2], (D, D)), "bk": rnd(ks[3], (1, D)),
        "wv": rnd(ks[4], (D, D)), "bv": rnd(ks[5], (1, D)),
        "wo": rnd(ks[6], (D, D)), "bo": rnd(ks[7], (1, D)),
        "wu": rnd(ks[8], (D, HID)), "bu": rnd(ks[9], (1, HID)),
        "wg": rnd(ks[10], (D, HID)), "bg": rnd(ks[11], (1, HID)),
        # down_proj kept in the PyTorch layout: (HID, 2H), logits interleaved (h, 2)
        "wd": rnd(ks[12], (HID, 2 * H)), "bd": rnd(ks[13], (1, 2 * H)),
    }

    query = rnd(ks[14], (B, S, D), 1.0)
    keyx = rnd(ks[15], (B, S, D), 1.0)
    value = rnd(ks[16], (B, S, D), 1.0)
    hidden = rnd(ks[17], (B, S, D), 1.0)
    position_bias_row = rnd(ks[18], (1, H, S, S), 0.5)
    causal_mask = jnp.tril(jnp.ones((S, S), jnp.float32))[None, None]  # ref only

    out, ent = multi_head_attention(params, query, keyx, value,
                                    position_bias_row, hidden, H)
    out = jax.block_until_ready(out)
    ent = jax.block_until_ready(ent)

    ref_out, ref_ent = reference(params, query, keyx, value,
                                 position_bias_row, causal_mask, hidden, H)
    assert out.shape == (B, S, D)
    assert jnp.allclose(out, ref_out, atol=1e-4, rtol=1e-4)
    assert jnp.allclose(ent, ref_ent, atol=1e-5, rtol=1e-5)
    print("KERNEL_OK")
</pallas_src>

<mosaic_0001>
module attributes {stable_mosaic.version = 11 : i64} {
  func.func @_mha_kernel(%arg0: i32, %arg1: memref<1x8x32xf32, #tpu.memory_space<vmem>>, %arg2: memref<1x8x32xf32, #tpu.memory_space<vmem>>, %arg3: memref<1x8x32xf32, #tpu.memory_space<vmem>>, %arg4: memref<1x8x32xf32, #tpu.memory_space<vmem>>, %arg5: memref<32x32xf32, #tpu.memory_space<vmem>>, %arg6: memref<1x32xf32, #tpu.memory_space<vmem>>, %arg7: memref<32x32xf32, #tpu.memory_space<vmem>>, %arg8: memref<1x32xf32, #tpu.memory_space<vmem>>, %arg9: memref<32x32xf32, #tpu.memory_space<vmem>>, %arg10: memref<1x32xf32, #tpu.memory_space<vmem>>, %arg11: memref<32x256xf32, #tpu.memory_space<vmem>>, %arg12: memref<1x256xf32, #tpu.memory_space<vmem>>, %arg13: memref<128x8xf32, #tpu.memory_space<vmem>>, %arg14: memref<1x8xf32, #tpu.memory_space<vmem>>, %arg15: memref<1x4x8x8xf32, #tpu.memory_space<vmem>>, %arg16: memref<32x32xf32, #tpu.memory_space<vmem>>, %arg17: memref<1x32xf32, #tpu.memory_space<vmem>>, %arg18: memref<1x8x32xf32, #tpu.memory_space<vmem>>, %arg19: memref<1x8x4xf32, #tpu.memory_space<vmem>>) attributes {dimension_semantics = [#tpu.dimension_semantics<parallel>], iteration_bounds = array<i64: 2>, scalar_prefetch = 0 : i64, scratch_operands = 0 : i64, tpu.core_type = #tpu.core_type<tc>, window_params = [{transform_indices = @transform_0, window_bounds = array<i64: 1, 8, 32>}, {transform_indices = @transform_1, window_bounds = array<i64: 1, 8, 32>}, {transform_indices = @transform_2, window_bounds = array<i64: 1, 8, 32>}, {transform_indices = @transform_3, window_bounds = array<i64: 1, 8, 32>}, {pipeline_mode = #tpu.pipeline_mode<synchronous>, transform_indices = @transform_4, window_bounds = array<i64: 32, 32>}, {pipeline_mode = #tpu.pipeline_mode<synchronous>, transform_indices = @transform_5, window_bounds = array<i64: 1, 32>}, {pipeline_mode = #tpu.pipeline_mode<synchronous>, transform_indices = @transform_6, window_bounds = array<i64: 32, 32>}, {pipeline_mode = #tpu.pipeline_mode<synchronous>, transform_indices = @transform_7, window_bounds = array<i64: 1, 32>}, {pipeline_mode = #tpu.pipeline_mode<synchronous>, transform_indices = @transform_8, window_bounds = array<i64: 32, 32>}, {pipeline_mode = #tpu.pipeline_mode<synchronous>, transform_indices = @transform_9, window_bounds = array<i64: 1, 32>}, {pipeline_mode = #tpu.pipeline_mode<synchronous>, transform_indices = @transform_10, window_bounds = array<i64: 32, 256>}, {pipeline_mode = #tpu.pipeline_mode<synchronous>, transform_indices = @transform_11, window_bounds = array<i64: 1, 256>}, {pipeline_mode = #tpu.pipeline_mode<synchronous>, transform_indices = @transform_12, window_bounds = array<i64: 128, 8>}, {pipeline_mode = #tpu.pipeline_mode<synchronous>, transform_indices = @transform_13, window_bounds = array<i64: 1, 8>}, {pipeline_mode = #tpu.pipeline_mode<synchronous>, transform_indices = @transform_14, window_bounds = array<i64: 1, 4, 8, 8>}, {pipeline_mode = #tpu.pipeline_mode<synchronous>, transform_indices = @transform_15, window_bounds = array<i64: 32, 32>}, {pipeline_mode = #tpu.pipeline_mode<synchronous>, transform_indices = @transform_16, window_bounds = array<i64: 1, 32>}, {transform_indices = @transform_17, window_bounds = array<i64: 1, 8, 32>}, {transform_indices = @transform_18, window_bounds = array<i64: 1, 8, 4>}]} {
    %c0 = arith.constant 0 : index
    %c0_0 = arith.constant 0 : index
    %c0_1 = arith.constant 0 : index
    %0 = vector.load %arg1[%c0, %c0_0, %c0_1] : memref<1x8x32xf32, #tpu.memory_space<vmem>>, vector<1x8x32xf32>
    %1 = vector.shape_cast %0 : vector<1x8x32xf32> to vector<8x32xf32>
    %c0_2 = arith.constant 0 : index
    %c0_3 = arith.constant 0 : index
    %c0_4 = arith.constant 0 : index
    %2 = vector.load %arg2[%c0_2, %c0_3, %c0_4] : memref<1x8x32xf32, #tpu.memory_space<vmem>>, vector<1x8x32xf32>
    %3 = vector.shape_cast %2 : vector<1x8x32xf32> to vector<8x32xf32>
    %c0_5 = arith.constant 0 : index
    %c0_6 = arith.constant 0 : index
    %c0_7 = arith.constant 0 : index
    %4 = vector.load %arg3[%c0_5, %c0_6, %c0_7] : memref<1x8x32xf32, #tpu.memory_space<vmem>>, vector<1x8x32xf32>
    %5 = vector.shape_cast %4 : vector<1x8x32xf32> to vector<8x32xf32>
    %c0_8 = arith.constant 0 : index
    %c0_9 = arith.constant 0 : index
    %c0_10 = arith.constant 0 : index
    %6 = vector.load %arg4[%c0_8, %c0_9, %c0_10] : memref<1x8x32xf32, #tpu.memory_space<vmem>>, vector<1x8x32xf32>
    %7 = vector.shape_cast %6 : vector<1x8x32xf32> to vector<8x32xf32>
    %c0_11 = arith.constant 0 : index
    %c0_12 = arith.constant 0 : index
    %8 = vector.load %arg5[%c0_11, %c0_12] : memref<32x32xf32, #tpu.memory_space<vmem>>, vector<32x32xf32>
    %cst = arith.constant dense<0.000000e+00> : vector<8x32xf32>
    %9 = tpu.matmul %1, %8, %cst {dimension_numbers = #tpu.dot_dimension_numbers<[1], [0], [0], [1], [0, 0, 1, 1], [], []>} : vector<8x32xf32>, vector<32x32xf32>, vector<8x32xf32> -> vector<8x32xf32>
    %c0_13 = arith.constant 0 : index
    %c0_14 = arith.constant 0 : index
    %10 = vector.load %arg6[%c0_13, %c0_14] : memref<1x32xf32, #tpu.memory_space<vmem>>, vector<1x32xf32>
    %11 = vector.broadcast %10 : vector<1x32xf32> to vector<8x32xf32>
    %12 = arith.addf %9, %11 : vector<8x32xf32>
    %cst_15 = arith.constant 0.353553385 : f32
    %13 = vector.broadcast %cst_15 : f32 to vector<8x32xf32>
    %14 = arith.mulf %12, %13 : vector<8x32xf32>
    %c0_16 = arith.constant 0 : index
    %c0_17 = arith.constant 0 : index
    %15 = vector.load %arg7[%c0_16, %c0_17] : memref<32x32xf32, #tpu.memory_space<vmem>>, vector<32x32xf32>
    %cst_18 = arith.constant dense<0.000000e+00> : vector<8x32xf32>
    %16 = tpu.matmul %3, %15, %cst_18 {dimension_numbers = #tpu.dot_dimension_numbers<[1], [0], [0], [1], [0, 0, 1, 1], [], []>} : vector<8x32xf32>, vector<32x32xf32>, vector<8x32xf32> -> vector<8x32xf32>
    %c0_19 = arith.constant 0 : index
    %c0_20 = arith.constant 0 : index
    %17 = vector.load %arg8[%c0_19, %c0_20] : memref<1x32xf32, #tpu.memory_space<vmem>>, vector<1x32xf32>
    %18 = vector.broadcast %17 : vector<1x32xf32> to vector<8x32xf32>
    %19 = arith.addf %16, %18 : vector<8x32xf32>
    %c0_21 = arith.constant 0 : index
    %c0_22 = arith.constant 0 : index
    %20 = vector.load %arg9[%c0_21, %c0_22] : memref<32x32xf32, #tpu.memory_space<vmem>>, vector<32x32xf32>
    %cst_23 = arith.constant dense<0.000000e+00> : vector<8x32xf32>
    %21 = tpu.matmul %5, %20, %cst_23 {dimension_numbers = #tpu.dot_dimension_numbers<[1], [0], [0], [1], [0, 0, 1, 1], [], []>} : vector<8x32xf32>, vector<32x32xf32>, vector<8x32xf32> -> vector<8x32xf32>
    %c0_24 = arith.constant 0 : index
    %c0_25 = arith.constant 0 : index
    %22 = vector.load %arg10[%c0_24, %c0_25] : memref<1x32xf32, #tpu.memory_space<vmem>>, vector<1x32xf32>
    %23 = vector.broadcast %22 : vector<1x32xf32> to vector<8x32xf32>
    %24 = arith.addf %21, %23 : vector<8x32xf32>
    %c0_26 = arith.constant 0 : index
    %c0_27 = arith.constant 0 : index
    %25 = vector.load %arg11[%c0_26, %c0_27] : memref<32x256xf32, #tpu.memory_space<vmem>>, vector<32x256xf32>
    %cst_28 = arith.constant dense<0.000000e+00> : vector<8x256xf32>
    %26 = tpu.matmul %7, %25, %cst_28 {dimension_numbers = #tpu.dot_dimension_numbers<[1], [0], [0], [1], [0, 0, 1, 1], [], []>} : vector<8x32xf32>, vector<32x256xf32>, vector<8x256xf32> -> vector<8x256xf32>
    %c0_29 = arith.constant 0 : index
    %c0_30 = arith.constant 0 : index
    %27 = vector.load %arg12[%c0_29, %c0_30] : memref<1x256xf32, #tpu.memory_space<vmem>>, vector<1x256xf32>
    %28 = vector.broadcast %27 : vector<1x256xf32> to vector<8x256xf32>
    %29 = arith.addf %26, %28 : vector<8x256xf32>
    %30 = vector.extract_strided_slice %29 {offsets = [0, 0], sizes = [8, 128], strides = [1, 1]} : vector<8x256xf32> to vector<8x128xf32>
    %31 = vector.extract_strided_slice %29 {offsets = [0, 128], sizes = [8, 128], strides = [1, 1]} : vector<8x256xf32> to vector<8x128xf32>
    %32 = arith.negf %30 : vector<8x128xf32>
    %33 = math.exp %32 : vector<8x128xf32>
    %cst_31 = arith.constant 1.000000e+00 : f32
    %34 = vector.broadcast %cst_31 : f32 to vector<8x128xf32>
    %35 = arith.addf %34, %33 : vector<8x128xf32>
    %36 = arith.divf %34, %35 : vector<8x128xf32>
    %37 = arith.mulf %30, %36 : vector<8x128xf32>
    %38 = arith.mulf %37, %31 : vector<8x128xf32>
    %c0_32 = arith.constant 0 : index
    %c0_33 = arith.constant 0 : index
    %39 = vector.load %arg13[%c0_32, %c0_33] : memref<128x8xf32, #tpu.memory_space<vmem>>, vector<128x8xf32>
    %cst_34 = arith.constant dense<0.000000e+00> : vector<8x8xf32>
    %40 = tpu.matmul %38, %39, %cst_34 {dimension_numbers = #tpu.dot_dimension_numbers<[1], [0], [0], [1], [0, 0, 1, 1], [], []>} : vector<8x128xf32>, vector<128x8xf32>, vector<8x8xf32> -> vector<8x8xf32>
    %c0_35 = arith.constant 0 : index
    %c0_36 = arith.constant 0 : index
    %41 = vector.load %arg14[%c0_35, %c0_36] : memref<1x8xf32, #tpu.memory_space<vmem>>, vector<1x8xf32>
    %42 = vector.broadcast %41 : vector<1x8xf32> to vector<8x8xf32>
    %43 = arith.addf %40, %42 : vector<8x8xf32>
    %44 = vector.extract_strided_slice %43 {offsets = [0, 0], sizes = [8, 4], strides = [1, 1]} : vector<8x8xf32> to vector<8x4xf32>
    %45 = vector.extract_strided_slice %43 {offsets = [0, 4], sizes = [8, 4], strides = [1, 1]} : vector<8x8xf32> to vector<8x4xf32>
    %46 = arith.subf %44, %45 : vector<8x4xf32>
    %47 = arith.negf %46 : vector<8x4xf32>
    %48 = math.exp %47 : vector<8x4xf32>
    %cst_37 = arith.constant 1.000000e+00 : f32
    %49 = vector.broadcast %cst_37 : f32 to vector<8x4xf32>
    %50 = arith.addf %49, %48 : vector<8x4xf32>
    %51 = arith.divf %49, %50 : vector<8x4xf32>
    %cst_38 = arith.constant 1.000000e+00 : f32
    %52 = vector.broadcast %cst_38 : f32 to vector<8x4xf32>
    %53 = arith.subf %52, %51 : vector<8x4xf32>
    %cst_39 = arith.constant 9.99999971E-10 : f32
    %54 = vector.broadcast %cst_39 : f32 to vector<8x4xf32>
    %55 = arith.addf %51, %54 : vector<8x4xf32>
    %56 = math.log %55 : vector<8x4xf32>
    %57 = arith.mulf %51, %56 : vector<8x4xf32>
    %cst_40 = arith.constant 9.99999971E-10 : f32
    %58 = vector.broadcast %cst_40 : f32 to vector<8x4xf32>
    %59 = arith.addf %53, %58 : vector<8x4xf32>
    %60 = math.log %59 : vector<8x4xf32>
    %61 = arith.mulf %53, %60 : vector<8x4xf32>
    %62 = arith.addf %57, %61 : vector<8x4xf32>
    %cst_41 = arith.constant 0.000000e+00 : f32
    %63 = vector.broadcast %cst_41 : f32 to vector<8x4xf32>
    %64 = arith.subf %63, %62 : vector<8x4xf32>
    %c0_42 = arith.constant 0 : index
    %c0_43 = arith.constant 0 : index
    %c0_44 = arith.constant 0 : index
    %65 = vector.load %arg19[%c0_42, %c0_43, %c0_44] : memref<1x8x4xf32, #tpu.memory_space<vmem>>, vector<1x8x4xf32>
    %66 = vector.shape_cast %65 : vector<1x8x4xf32> to vector<8x4xf32>
    %67 = vector.shape_cast %64 : vector<8x4xf32> to vector<1x8x4xf32>
    tpu.vector_store %arg19[%c0_42, %c0_43, %c0_44], %67 {strides = array<i32>} : memref<1x8x4xf32, #tpu.memory_space<vmem>>, vector<1x8x4xf32>,
    %68 = tpu.iota {dimensions = array<i32: 0>} : vector<8x8xi32>
    %69 = tpu.iota {dimensions = array<i32: 1>} : vector<8x8xi32>
    %70 = arith.cmpi sle, %69, %68 : vector<8x8xi32>
    %c0_45 = arith.constant 0 : index
    %c0_46 = arith.constant 0 : index
    %71 = vector.load %arg16[%c0_45, %c0_46] : memref<32x32xf32, #tpu.memory_space<vmem>>, vector<32x32xf32>
    %c0_47 = arith.constant 0 : index
    %c0_48 = arith.constant 0 : index
    %72 = vector.load %arg17[%c0_47, %c0_48] : memref<1x32xf32, #tpu.memory_space<vmem>>, vector<1x32xf32>
    %73 = vector.extract_strided_slice %14 {offsets = [0, 0], sizes = [8, 8], strides = [1, 1]} : vector<8x32xf32> to vector<8x8xf32>
    %74 = vector.extract_strided_slice %19 {offsets = [0, 0], sizes = [8, 8], strides = [1, 1]} : vector<8x32xf32> to vector<8x8xf32>
    %75 = vector.extract_strided_slice %24 {offsets = [0, 0], sizes = [8, 8], strides = [1, 1]} : vector<8x32xf32> to vector<8x8xf32>
    %c0_49 = arith.constant 0 : index
    %c0_50 = arith.constant 0 : index
    %c0_51 = arith.constant 0 : index
    %c0_52 = arith.constant 0 : index
    %76 = vector.load %arg15[%c0_49, %c0_50, %c0_51, %c0_52] : memref<1x4x8x8xf32, #tpu.memory_space<vmem>>, vector<1x1x8x8xf32>
    %77 = vector.shape_cast %76 : vector<1x1x8x8xf32> to vector<8x8xf32>
    %cst_53 = arith.constant dense<0.000000e+00> : vector<8x8xf32>
    %78 = tpu.matmul %73, %74, %cst_53 {dimension_numbers = #tpu.dot_dimension_numbers<[1], [1], [0], [0], [0, 0, 1, 0], [], []>} : vector<8x8xf32>, vector<8x8xf32>, vector<8x8xf32> -> vector<8x8xf32>
    %cst_54 = arith.constant -1.000000e+09 : f32
    %79 = vector.broadcast %cst_54 : f32 to vector<8x8xf32>
    %80 = arith.select %70, %78, %79 : vector<8x8xi1>, vector<8x8xf32>
    %cst_55 = arith.constant dense<0xFF800000> : vector<8xf32>
    %81 = vector.multi_reduction <maximumf>, %80, %cst_55 [1] : vector<8x8xf32> to vector<8xf32>
    %82 = vector.shape_cast %81 : vector<8xf32> to vector<8x1xf32>
    %83 = vector.broadcast %82 : vector<8x1xf32> to vector<8x8xf32>
    %84 = arith.subf %80, %83 : vector<8x8xf32>
    %85 = math.exp %84 : vector<8x8xf32>
    %86 = arith.mulf %85, %77 : vector<8x8xf32>
    %cst_56 = arith.constant dense<0.000000e+00> : vector<8xf32>
    %87 = vector.multi_reduction <add>, %85, %cst_56 [1] : vector<8x8xf32> to vector<8xf32>
    %88 = vector.shape_cast %87 : vector<8xf32> to vector<8x1xf32>
    %cst_57 = arith.constant dense<0.000000e+00> : vector<8xf32>
    %89 = vector.multi_reduction <add>, %86, %cst_57 [1] : vector<8x8xf32> to vector<8xf32>
    %90 = vector.shape_cast %89 : vector<8xf32> to vector<8x1xf32>
    %91 = vector.extract_strided_slice %51 {offsets = [0, 0], sizes = [8, 1], strides = [1, 1]} : vector<8x4xf32> to vector<8x1xf32>
    %cst_58 = arith.constant 1.000000e+00 : f32
    %92 = vector.broadcast %cst_58 : f32 to vector<8x1xf32>
    %93 = arith.subf %92, %91 : vector<8x1xf32>
    %94 = arith.divf %93, %88 : vector<8x1xf32>
    %95 = arith.divf %91, %90 : vector<8x1xf32>
    %96 = vector.broadcast %94 : vector<8x1xf32> to vector<8x8xf32>
    %97 = arith.mulf %85, %96 : vector<8x8xf32>
    %98 = vector.broadcast %95 : vector<8x1xf32> to vector<8x8xf32>
    %99 = arith.mulf %86, %98 : vector<8x8xf32>
    %100 = arith.addf %97, %99 : vector<8x8xf32>
    %cst_59 = arith.constant dense<0.000000e+00> : vector<8x8xf32>
    %101 = tpu.matmul %100, %75, %cst_59 {dimension_numbers = #tpu.dot_dimension_numbers<[1], [0], [0], [1], [0, 0, 1, 1], [], []>} : vector<8x8xf32>, vector<8x8xf32>, vector<8x8xf32> -> vector<8x8xf32>
    %102 = vector.extract_strided_slice %71 {offsets = [0, 0], sizes = [8, 32], strides = [1, 1]} : vector<32x32xf32> to vector<8x32xf32>
    %cst_60 = arith.constant dense<0.000000e+00> : vector<8x32xf32>
    %103 = tpu.matmul %101, %102, %cst_60 {dimension_numbers = #tpu.dot_dimension_numbers<[1], [0], [0], [1], [0, 0, 1, 1], [], []>} : vector<8x8xf32>, vector<8x32xf32>, vector<8x32xf32> -> vector<8x32xf32>
    %104 = vector.broadcast %72 : vector<1x32xf32> to vector<8x32xf32>
    %105 = arith.addf %104, %103 : vector<8x32xf32>
    %106 = vector.extract_strided_slice %14 {offsets = [0, 8], sizes = [8, 8], strides = [1, 1]} : vector<8x32xf32> to vector<8x8xf32>
    %107 = vector.extract_strided_slice %19 {offsets = [0, 8], sizes = [8, 8], strides = [1, 1]} : vector<8x32xf32> to vector<8x8xf32>
    %108 = vector.extract_strided_slice %24 {offsets = [0, 8], sizes = [8, 8], strides = [1, 1]} : vector<8x32xf32> to vector<8x8xf32>
    %c0_61 = arith.constant 0 : index
    %c1 = arith.constant 1 : index
    %c0_62 = arith.constant 0 : index
    %c0_63 = arith.constant 0 : index
    %109 = vector.load %arg15[%c0_61, %c1, %c0_62, %c0_63] : memref<1x4x8x8xf32, #tpu.memory_space<vmem>>, vector<1x1x8x8xf32>
    %110 = vector.shape_cast %109 : vector<1x1x8x8xf32> to vector<8x8xf32>
    %cst_64 = arith.constant dense<0.000000e+00> : vector<8x8xf32>
    %111 = tpu.matmul %106, %107, %cst_64 {dimension_numbers = #tpu.dot_dimension_numbers<[1], [1], [0], [0], [0, 0, 1, 0], [], []>} : vector<8x8xf32>, vector<8x8xf32>, vector<8x8xf32> -> vector<8x8xf32>
    %cst_65 = arith.constant -1.000000e+09 : f32
    %112 = vector.broadcast %cst_65 : f32 to vector<8x8xf32>
    %113 = arith.select %70, %111, %112 : vector<8x8xi1>, vector<8x8xf32>
    %cst_66 = arith.constant dense<0xFF800000> : vector<8xf32>
    %114 = vector.multi_reduction <maximumf>, %113, %cst_66 [1] : vector<8x8xf32> to vector<8xf32>
    %115 = vector.shape_cast %114 : vector<8xf32> to vector<8x1xf32>
    %116 = vector.broadcast %115 : vector<8x1xf32> to vector<8x8xf32>
    %117 = arith.subf %113, %116 : vector<8x8xf32>
    %118 = math.exp %117 : vector<8x8xf32>
    %119 = arith.mulf %118, %110 : vector<8x8xf32>
    %cst_67 = arith.constant dense<0.000000e+00> : vector<8xf32>
    %120 = vector.multi_reduction <add>, %118, %cst_67 [1] : vector<8x8xf32> to vector<8xf32>
    %121 = vector.shape_cast %120 : vector<8xf32> to vector<8x1xf32>
    %cst_68 = arith.constant dense<0.000000e+00> : vector<8xf32>
    %122 = vector.multi_reduction <add>, %119, %cst_68 [1] : vector<8x8xf32> to vector<8xf32>
    %123 = vector.shape_cast %122 : vector<8xf32> to vector<8x1xf32>
    %124 = vector.extract_strided_slice %51 {offsets = [0, 1], sizes = [8, 1], strides = [1, 1]} : vector<8x4xf32> to vector<8x1xf32>
    %cst_69 = arith.constant 1.000000e+00 : f32
    %125 = vector.broadcast %cst_69 : f32 to vector<8x1xf32>
    %126 = arith.subf %125, %124 : vector<8x1xf32>
    %127 = arith.divf %126, %121 : vector<8x1xf32>
    %128 = arith.divf %124, %123 : vector<8x1xf32>
    %129 = vector.broadcast %127 : vector<8x1xf32> to vector<8x8xf32>
    %130 = arith.mulf %118, %129 : vector<8x8xf32>
    %131 = vector.broadcast %128 : vector<8x1xf32> to vector<8x8xf32>
    %132 = arith.mulf %119, %131 : vector<8x8xf32>
    %133 = arith.addf %130, %132 : vector<8x8xf32>
    %cst_70 = arith.constant dense<0.000000e+00> : vector<8x8xf32>
    %134 = tpu.matmul %133, %108, %cst_70 {dimension_numbers = #tpu.dot_dimension_numbers<[1], [0], [0], [1], [0, 0, 1, 1], [], []>} : vector<8x8xf32>, vector<8x8xf32>, vector<8x8xf32> -> vector<8x8xf32>
    %135 = vector.extract_strided_slice %71 {offsets = [8, 0], sizes = [8, 32], strides = [1, 1]} : vector<32x32xf32> to vector<8x32xf32>
    %cst_71 = arith.constant dense<0.000000e+00> : vector<8x32xf32>
    %136 = tpu.matmul %134, %135, %cst_71 {dimension_numbers = #tpu.dot_dimension_numbers<[1], [0], [0], [1], [0, 0, 1, 1], [], []>} : vector<8x8xf32>, vector<8x32xf32>, vector<8x32xf32> -> vector<8x32xf32>
    %137 = arith.addf %105, %136 : vector<8x32xf32>
    %138 = vector.extract_strided_slice %14 {offsets = [0, 16], sizes = [8, 8], strides = [1, 1]} : vector<8x32xf32> to vector<8x8xf32>
    %139 = vector.extract_strided_slice %19 {offsets = [0, 16], sizes = [8, 8], strides = [1, 1]} : vector<8x32xf32> to vector<8x8xf32>
    %140 = vector.extract_strided_slice %24 {offsets = [0, 16], sizes = [8, 8], strides = [1, 1]} : vector<8x32xf32> to vector<8x8xf32>
    %c0_72 = arith.constant 0 : index
    %c2 = arith.constant 2 : index
    %c0_73 = arith.constant 0 : index
    %c0_74 = arith.constant 0 : index
    %141 = vector.load %arg15[%c0_72, %c2, %c0_73, %c0_74] : memref<1x4x8x8xf32, #tpu.memory_space<vmem>>, vector<1x1x8x8xf32>
    %142 = vector.shape_cast %141 : vector<1x1x8x8xf32> to vector<8x8xf32>
    %cst_75 = arith.constant dense<0.000000e+00> : vector<8x8xf32>
    %143 = tpu.matmul %138, %139, %cst_75 {dimension_numbers = #tpu.dot_dimension_numbers<[1], [1], [0], [0], [0, 0, 1, 0], [], []>} : vector<8x8xf32>, vector<8x8xf32>, vector<8x8xf32> -> vector<8x8xf32>
    %cst_76 = arith.constant -1.000000e+09 : f32
    %144 = vector.broadcast %cst_76 : f32 to vector<8x8xf32>
    %145 = arith.select %70, %143, %144 : vector<8x8xi1>, vector<8x8xf32>
    %cst_77 = arith.constant dense<0xFF800000> : vector<8xf32>
    %146 = vector.multi_reduction <maximumf>, %145, %cst_77 [1] : vector<8x8xf32> to vector<8xf32>
    %147 = vector.shape_cast %146 : vector<8xf32> to vector<8x1xf32>
    %148 = vector.broadcast %147 : vector<8x1xf32> to vector<8x8xf32>
    %149 = arith.subf %145, %148 : vector<8x8xf32>
    %150 = math.exp %149 : vector<8x8xf32>
    %151 = arith.mulf %150, %142 : vector<8x8xf32>
    %cst_78 = arith.constant dense<0.000000e+00> : vector<8xf32>
    %152 = vector.multi_reduction <add>, %150, %cst_78 [1] : vector<8x8xf32> to vector<8xf32>
    %153 = vector.shape_cast %152 : vector<8xf32> to vector<8x1xf32>
    %cst_79 = arith.constant dense<0.000000e+00> : vector<8xf32>
    %154 = vector.multi_reduction <add>, %151, %cst_79 [1] : vector<8x8xf32> to vector<8xf32>
    %155 = vector.shape_cast %154 : vector<8xf32> to vector<8x1xf32>
    %156 = vector.extract_strided_slice %51 {offsets = [0, 2], sizes = [8, 1], strides = [1, 1]} : vector<8x4xf32> to vector<8x1xf32>
    %cst_80 = arith.constant 1.000000e+00 : f32
    %157 = vector.broadcast %cst_80 : f32 to vector<8x1xf32>
    %158 = arith.subf %157, %156 : vector<8x1xf32>
    %159 = arith.divf %158, %153 : vector<8x1xf32>
    %160 = arith.divf %156, %155 : vector<8x1xf32>
    %161 = vector.broadcast %159 : vector<8x1xf32> to vector<8x8xf32>
    %162 = arith.mulf %150, %161 : vector<8x8xf32>
    %163 = vector.broadcast %160 : vector<8x1xf32> to vector<8x8xf32>
    %164 = arith.mulf %151, %163 : vector<8x8xf32>
    %165 = arith.addf %162, %164 : vector<8x8xf32>
    %cst_81 = arith.constant dense<0.000000e+00> : vector<8x8xf32>
    %166 = tpu.matmul %165, %140, %cst_81 {dimension_numbers = #tpu.dot_dimension_numbers<[1], [0], [0], [1], [0, 0, 1, 1], [], []>} : vector<8x8xf32>, vector<8x8xf32>, vector<8x8xf32> -> vector<8x8xf32>
    %167 = vector.extract_strided_slice %71 {offsets = [16, 0], sizes = [8, 32], strides = [1, 1]} : vector<32x32xf32> to vector<8x32xf32>
    %cst_82 = arith.constant dense<0.000000e+00> : vector<8x32xf32>
    %168 = tpu.matmul %166, %167, %cst_82 {dimension_numbers = #tpu.dot_dimension_numbers<[1], [0], [0], [1], [0, 0, 1, 1], [], []>} : vector<8x8xf32>, vector<8x32xf32>, vector<8x32xf32> -> vector<8x32xf32>
    %169 = arith.addf %137, %168 : vector<8x32xf32>
    %170 = vector.extract_strided_slice %14 {offsets = [0, 24], sizes = [8, 8], strides = [1, 1]} : vector<8x32xf32> to vector<8x8xf32>
    %171 = vector.extract_strided_slice %19 {offsets = [0, 24], sizes = [8, 8], strides = [1, 1]} : vector<8x32xf32> to vector<8x8xf32>
    %172 = vector.extract_strided_slice %24 {offsets = [0, 24], sizes = [8, 8], strides = [1, 1]} : vector<8x32xf32> to vector<8x8xf32>
    %c0_83 = arith.constant 0 : index
    %c3 = arith.constant 3 : index
    %c0_84 = arith.constant 0 : index
    %c0_85 = arith.constant 0 : index
    %173 = vector.load %arg15[%c0_83, %c3, %c0_84, %c0_85] : memref<1x4x8x8xf32, #tpu.memory_space<vmem>>, vector<1x1x8x8xf32>
    %174 = vector.shape_cast %173 : vector<1x1x8x8xf32> to vector<8x8xf32>
    %cst_86 = arith.constant dense<0.000000e+00> : vector<8x8xf32>
    %175 = tpu.matmul %170, %171, %cst_86 {dimension_numbers = #tpu.dot_dimension_numbers<[1], [1], [0], [0], [0, 0, 1, 0], [], []>} : vector<8x8xf32>, vector<8x8xf32>, vector<8x8xf32> -> vector<8x8xf32>
    %cst_87 = arith.constant -1.000000e+09 : f32
    %176 = vector.broadcast %cst_87 : f32 to vector<8x8xf32>
    %177 = arith.select %70, %175, %176 : vector<8x8xi1>, vector<8x8xf32>
    %cst_88 = arith.constant dense<0xFF800000> : vector<8xf32>
    %178 = vector.multi_reduction <maximumf>, %177, %cst_88 [1] : vector<8x8xf32> to vector<8xf32>
    %179 = vector.shape_cast %178 : vector<8xf32> to vector<8x1xf32>
    %180 = vector.broadcast %179 : vector<8x1xf32> to vector<8x8xf32>
    %181 = arith.subf %177, %180 : vector<8x8xf32>
    %182 = math.exp %181 : vector<8x8xf32>
    %183 = arith.mulf %182, %174 : vector<8x8xf32>
    %cst_89 = arith.constant dense<0.000000e+00> : vector<8xf32>
    %184 = vector.multi_reduction <add>, %182, %cst_89 [1] : vector<8x8xf32> to vector<8xf32>
    %185 = vector.shape_cast %184 : vector<8xf32> to vector<8x1xf32>
    %cst_90 = arith.constant dense<0.000000e+00> : vector<8xf32>
    %186 = vector.multi_reduction <add>, %183, %cst_90 [1] : vector<8x8xf32> to vector<8xf32>
    %187 = vector.shape_cast %186 : vector<8xf32> to vector<8x1xf32>
    %188 = vector.extract_strided_slice %51 {offsets = [0, 3], sizes = [8, 1], strides = [1, 1]} : vector<8x4xf32> to vector<8x1xf32>
    %cst_91 = arith.constant 1.000000e+00 : f32
    %189 = vector.broadcast %cst_91 : f32 to vector<8x1xf32>
    %190 = arith.subf %189, %188 : vector<8x1xf32>
    %191 = arith.divf %190, %185 : vector<8x1xf32>
    %192 = arith.divf %188, %187 : vector<8x1xf32>
    %193 = vector.broadcast %191 : vector<8x1xf32> to vector<8x8xf32>
    %194 = arith.mulf %182, %193 : vector<8x8xf32>
    %195 = vector.broadcast %192 : vector<8x1xf32> to vector<8x8xf32>
    %196 = arith.mulf %183, %195 : vector<8x8xf32>
    %197 = arith.addf %194, %196 : vector<8x8xf32>
    %cst_92 = arith.constant dense<0.000000e+00> : vector<8x8xf32>
    %198 = tpu.matmul %197, %172, %cst_92 {dimension_numbers = #tpu.dot_dimension_numbers<[1], [0], [0], [1], [0, 0, 1, 1], [], []>} : vector<8x8xf32>, vector<8x8xf32>, vector<8x8xf32> -> vector<8x8xf32>
    %199 = vector.extract_strided_slice %71 {offsets = [24, 0], sizes = [8, 32], strides = [1, 1]} : vector<32x32xf32> to vector<8x32xf32>
    %cst_93 = arith.constant dense<0.000000e+00> : vector<8x32xf32>
    %200 = tpu.matmul %198, %199, %cst_93 {dimension_numbers = #tpu.dot_dimension_numbers<[1], [0], [0], [1], [0, 0, 1, 1], [], []>} : vector<8x8xf32>, vector<8x32xf32>, vector<8x32xf32> -> vector<8x32xf32>
    %201 = arith.addf %169, %200 : vector<8x32xf32>
    %c0_94 = arith.constant 0 : index
    %c0_95 = arith.constant 0 : index
    %c0_96 = arith.constant 0 : index
    %202 = vector.load %arg18[%c0_94, %c0_95, %c0_96] : memref<1x8x32xf32, #tpu.memory_space<vmem>>, vector<1x8x32xf32>
    %203 = vector.shape_cast %202 : vector<1x8x32xf32> to vector<8x32xf32>
    %204 = vector.shape_cast %201 : vector<8x32xf32> to vector<1x8x32xf32>
    tpu.vector_store %arg18[%c0_94, %c0_95, %c0_96], %204 {strides = array<i32>} : memref<1x8x32xf32, #tpu.memory_space<vmem>>, vector<1x8x32xf32>,
    return
  }
  func.func @transform_0(%arg0: i32) -> (i32, i32, i32) {
    %c0_i32 = arith.constant 0 : i32
    %c0_i32_0 = arith.constant 0 : i32
    %c0_i32_1 = arith.constant 0 : i32
    return %arg0, %c0_i32, %c0_i32_0 : i32, i32, i32
  }
  func.func @transform_1(%arg0: i32) -> (i32, i32, i32) {
    %c0_i32 = arith.constant 0 : i32
    %c0_i32_0 = arith.constant 0 : i32
    %c0_i32_1 = arith.constant 0 : i32
    return %arg0, %c0_i32, %c0_i32_0 : i32, i32, i32
  }
  func.func @transform_2(%arg0: i32) -> (i32, i32, i32) {
    %c0_i32 = arith.constant 0 : i32
    %c0_i32_0 = arith.constant 0 : i32
    %c0_i32_1 = arith.constant 0 : i32
    return %arg0, %c0_i32, %c0_i32_0 : i32, i32, i32
  }
  func.func @transform_3(%arg0: i32) -> (i32, i32, i32) {
    %c0_i32 = arith.constant 0 : i32
    %c0_i32_0 = arith.constant 0 : i32
    %c0_i32_1 = arith.constant 0 : i32
    return %arg0, %c0_i32, %c0_i32_0 : i32, i32, i32
  }
  func.func @transform_4(%arg0: i32) -> (i32, i32) {
    %c0_i32 = arith.constant 0 : i32
    %c0_i32_0 = arith.constant 0 : i32
    %c0_i32_1 = arith.constant 0 : i32
    return %c0_i32, %c0_i32_0 : i32, i32
  }
  func.func @transform_5(%arg0: i32) -> (i32, i32) {
    %c0_i32 = arith.constant 0 : i32
    %c0_i32_0 = arith.constant 0 : i32
    %c0_i32_1 = arith.constant 0 : i32
    return %c0_i32, %c0_i32_0 : i32, i32
  }
  func.func @transform_6(%arg0: i32) -> (i32, i32) {
    %c0_i32 = arith.constant 0 : i32
    %c0_i32_0 = arith.constant 0 : i32
    %c0_i32_1 = arith.constant 0 : i32
    return %c0_i32, %c0_i32_0 : i32, i32
  }
  func.func @transform_7(%arg0: i32) -> (i32, i32) {
    %c0_i32 = arith.constant 0 : i32
    %c0_i32_0 = arith.constant 0 : i32
    %c0_i32_1 = arith.constant 0 : i32
    return %c0_i32, %c0_i32_0 : i32, i32
  }
  func.func @transform_8(%arg0: i32) -> (i32, i32) {
    %c0_i32 = arith.constant 0 : i32
    %c0_i32_0 = arith.constant 0 : i32
    %c0_i32_1 = arith.constant 0 : i32
    return %c0_i32, %c0_i32_0 : i32, i32
  }
  func.func @transform_9(%arg0: i32) -> (i32, i32) {
    %c0_i32 = arith.constant 0 : i32
    %c0_i32_0 = arith.constant 0 : i32
    %c0_i32_1 = arith.constant 0 : i32
    return %c0_i32, %c0_i32_0 : i32, i32
  }
  func.func @transform_10(%arg0: i32) -> (i32, i32) {
    %c0_i32 = arith.constant 0 : i32
    %c0_i32_0 = arith.constant 0 : i32
    %c0_i32_1 = arith.constant 0 : i32
    return %c0_i32, %c0_i32_0 : i32, i32
  }
  func.func @transform_11(%arg0: i32) -> (i32, i32) {
    %c0_i32 = arith.constant 0 : i32
    %c0_i32_0 = arith.constant 0 : i32
    %c0_i32_1 = arith.constant 0 : i32
    return %c0_i32, %c0_i32_0 : i32, i32
  }
  func.func @transform_12(%arg0: i32) -> (i32, i32) {
    %c0_i32 = arith.constant 0 : i32
    %c0_i32_0 = arith.constant 0 : i32
    %c0_i32_1 = arith.constant 0 : i32
    return %c0_i32, %c0_i32_0 : i32, i32
  }
  func.func @transform_13(%arg0: i32) -> (i32, i32) {
    %c0_i32 = arith.constant 0 : i32
    %c0_i32_0 = arith.constant 0 : i32
    %c0_i32_1 = arith.constant 0 : i32
    return %c0_i32, %c0_i32_0 : i32, i32
  }
  func.func @transform_14(%arg0: i32) -> (i32, i32, i32, i32) {
    %c0_i32 = arith.constant 0 : i32
    %c0_i32_0 = arith.constant 0 : i32
    %c0_i32_1 = arith.constant 0 : i32
    %c0_i32_2 = arith.constant 0 : i32
    %c0_i32_3 = arith.constant 0 : i32
    return %c0_i32, %c0_i32_0, %c0_i32_1, %c0_i32_2 : i32, i32, i32, i32
  }
  func.func @transform_15(%arg0: i32) -> (i32, i32) {
    %c0_i32 = arith.constant 0 : i32
    %c0_i32_0 = arith.constant 0 : i32
    %c0_i32_1 = arith.constant 0 : i32
    return %c0_i32, %c0_i32_0 : i32, i32
  }
  func.func @transform_16(%arg0: i32) -> (i32, i32) {
    %c0_i32 = arith.constant 0 : i32
    %c0_i32_0 = arith.constant 0 : i32
    %c0_i32_1 = arith.constant 0 : i32
    return %c0_i32, %c0_i32_0 : i32, i32
  }
  func.func @transform_17(%arg0: i32) -> (i32, i32, i32) {
    %c0_i32 = arith.constant 0 : i32
    %c0_i32_0 = arith.constant 0 : i32
    %c0_i32_1 = arith.constant 0 : i32
    return %arg0, %c0_i32, %c0_i32_0 : i32, i32, i32
  }
  func.func @transform_18(%arg0: i32) -> (i32, i32, i32) {
    %c0_i32 = arith.constant 0 : i32
    %c0_i32_0 = arith.constant 0 : i32
    %c0_i32_1 = arith.constant 0 : i32
    return %arg0, %c0_i32, %c0_i32_0 : i32, i32, i32
  }
}

</mosaic_0001>

<llo_original>
// kernel: tpu_custom_call.1
$region0: #{tpu_custom_call.1}
  #allocation0 [shape = 'u32[]', space=smem, size = 0x4, offset = 0x4, fixed_abs, tag = 'smem constant byte address 0x4 - core index']
  #allocation1 [shape = 'u32[72,128]{1,0:T(1,128)}', space=vmem, size = 0x9000, scoped, tag = 'internal scratch']
  %s0 = inlined_call_operand.hbm [shape: f32[2,8,32], index: 0, kind: input, shape index: {}]
  %s1 = inlined_call_operand.hbm [shape: f32[2,8,32], index: 1, kind: input, shape index: {}]
  %s2 = inlined_call_operand.hbm [shape: f32[2,8,32], index: 2, kind: input, shape index: {}]
  %s3 = inlined_call_operand.hbm [shape: f32[2,8,32], index: 3, kind: input, shape index: {}]
  %s4 = inlined_call_operand.vmem [shape: f32[32,32], index: 4, kind: input, shape index: {}]
  %s5 = inlined_call_operand.vmem [shape: f32[1,32], index: 5, kind: input, shape index: {}]
  %s6 = inlined_call_operand.vmem [shape: f32[32,32], index: 6, kind: input, shape index: {}]
  %s7 = inlined_call_operand.vmem [shape: f32[1,32], index: 7, kind: input, shape index: {}]
  %s8 = inlined_call_operand.hbm [shape: f32[32,32], index: 8, kind: input, shape index: {}]
  %s9 = inlined_call_operand.vmem [shape: f32[1,32], index: 9, kind: input, shape index: {}]
  %s10 = inlined_call_operand.vmem [shape: f32[32,256], index: 10, kind: input, shape index: {}]
  %s11 = inlined_call_operand.vmem [shape: f32[1,256], index: 11, kind: input, shape index: {}]
  %s12 = inlined_call_operand.vmem [shape: f32[128,8], index: 12, kind: input, shape index: {}]
  %s13 = inlined_call_operand.vmem [shape: f32[1,8], index: 13, kind: input, shape index: {}]
  %s14 = inlined_call_operand.hbm [shape: f32[1,4,8,8], index: 14, kind: input, shape index: {}]
  %s15 = inlined_call_operand.hbm [shape: f32[32,32], index: 15, kind: input, shape index: {}]
  %s16 = inlined_call_operand.vmem [shape: f32[1,32], index: 16, kind: input, shape index: {}]
  %s17 = inlined_call_operand.hbm [shape: f32[2,8,32], index: 17, kind: output, shape index: {0}]
  %s18 = inlined_call_operand.vmem [shape: f32[2,8,4], index: 18, kind: output, shape index: {1}]
  %19 = xla_tuple %s17, %s18
  %s20 = sld [smem:[#allocation0]]
  $region137: #{tpu_custom_call.1} parent=0
    _
  %s22 = ssub.s32 1, %s20
  %s23 = scalar_select 0, %s22, %s20
  $region1: #{tpu_custom_call.1} parent=0
    #allocation2 [shape = 'u8[8192]{0}', space=vmem, size = 0x2000, scoped, tag = 'input window, operand 0']
    #allocation3 [shape = 's32[2]{0}', space=sflag, size = 0x8, scoped, tag = 'scoped memory for tpu_custom_call.1']
    #allocation4 [shape = 's32[2]{0}', space=sflag, size = 0x8, scoped, tag = 'scoped memory for tpu_custom_call.1']
    #allocation5 [shape = 'u8[8192]{0}', space=vmem, size = 0x2000, scoped, tag = 'input window, operand 1']
    #allocation6 [shape = 's32[2]{0}', space=sflag, size = 0x8, scoped, tag = 'scoped memory for tpu_custom_call.1']
    #allocation7 [shape = 'u8[8192]{0}', space=vmem, size = 0x2000, scoped, tag = 'input window, operand 2']
    #allocation8 [shape = 'u8[8192]{0}', space=vmem, size = 0x2000, scoped, tag = 'input window, operand 3']
    #allocation9 [shape = 's32[2]{0}', space=sflag, size = 0x8, scoped, tag = 'scoped memory for tpu_custom_call.1']
    #allocation10 [shape = 'u8[16384]{0}', space=vmem, size = 0x4000, scoped, tag = 'input window, operand 8, single buffered']
    #allocation11 [shape = 'u8[16384]{0}', space=vmem, size = 0x4000, scoped, tag = 'input window, operand 14, single buffered']
    #allocation12 [shape = 's32[1]{0}', space=sflag, size = 0x4, scoped, tag = 'scoped memory for tpu_custom_call.1']
    #allocation13 [shape = 'u8[16384]{0}', space=vmem, size = 0x4000, scoped, tag = 'input window, operand 15, single buffered']
    #allocation14 [shape = 'u8[8192]{0}', space=vmem, size = 0x2000, scoped, tag = 'output window, operand 0']
    %24 = vsyncpa [#allocation3], 0
    %s25 = scalar_lea.sflag [#allocation3], 1
    %26 = vsyncpa %s25, 0
    %27 = vsyncpa [#allocation6], 0
    %s28 = scalar_lea.sflag [#allocation6], 1
    %29 = vsyncpa %s28, 0
    %30 = vsyncpa [#allocation9], 0
    %s31 = scalar_lea.sflag [#allocation9], 1
    %32 = vsyncpa %s31, 0
    %33 = vsyncpa [#allocation12], 0
    %34 = vsyncpa [#allocation4], 0
    %s35 = scalar_lea.sflag [#allocation4], 1
    %36 = vsyncpa %s35, 0
    loop: start=0, step=1, limit=4
    $region2: #{tpu_custom_call.1} parent=1 // loop_pre_header
      _
    $region3: #{tpu_custom_call.1} parent=1 // loop_header
      %s38 = sphi 0, %s42
      %p39 = scmp.ge.s32.totalorder %s38, 4
      %s48 = sphi 0, %s50
      %s51 = sphi 0, %s48
      %s52 = sphi 0, %s51
      %s68 = sphi 0, %s52
      %s74 = sphi 0, %s76
      %s77 = sphi 0, %s74
      %s78 = sphi 0, %s77
      %s94 = sphi 0, %s78
      %s100 = sphi 0, %s102
      %s103 = sphi 0, %s100
      %s104 = sphi 0, %s103
      %s120 = sphi 0, %s104
      %s126 = sphi 0, %s128
      %s129 = sphi 0, %s126
      %s130 = sphi 0, %s129
      %s146 = sphi 0, %s130
      %s150 = sphi 0, %s150
      %s152 = sphi 0, %s150
      %s153 = sphi 0, %s152
      %s167 = sphi 0, %s153
      %s171 = sphi 0, %s171
      %s173 = sphi 0, %s171
      %s174 = sphi 0, %s173
      %s188 = sphi 0, %s174
      %s192 = sphi 0, %s192
      %s194 = sphi 0, %s192
      %s195 = sphi 0, %s194
      %s209 = sphi 0, %s195
      %s213 = sphi 0, %s213
      %s215 = sphi 0, %s213
      %s216 = sphi 0, %s215
      %s230 = sphi 0, %s216
      %s234 = sphi 0, %s234
      %s236 = sphi 0, %s234
      %s237 = sphi 0, %s236
      %s251 = sphi 0, %s237
      %s255 = sphi 0, %s255
      %s257 = sphi 0, %s255
      %s258 = sphi 0, %s257
      %s272 = sphi 0, %s258
      %s276 = sphi 0, %s276
      %s278 = sphi 0, %s276
      %s279 = sphi 0, %s278
      %s293 = sphi 0, %s279
      %s297 = sphi 0, %s297
      %s299 = sphi 0, %s297
      %s300 = sphi 0, %s299
      %s314 = sphi 0, %s300
      %s318 = sphi 0, %s318
      %s320 = sphi 0, %s318
      %s321 = sphi 0, %s320
      %s335 = sphi 0, %s321
      %s339 = sphi 0, %s339
      %s341 = sphi 0, %s339
      %s342 = sphi 0, %s341
      %s356 = sphi 0, %s342
      %s360 = sphi 0, %s360
      %s362 = sphi 0, %s360
      %s363 = sphi 0, %s362
      %s377 = sphi 0, %s363
      %s381 = sphi 0, %s381
      %s383 = sphi 0, %s381
      %s384 = sphi 0, %s383
      %s398 = sphi 0, %s384
      %s402 = sphi 0, %s402
      %s404 = sphi 0, %s402
      %s405 = sphi 0, %s404
      %s419 = sphi 0, %s405
      %s425 = sphi 0, %s427
      %s428 = sphi 0, %s425
      %s429 = sphi 0, %s428
      %s445 = sphi 0, %s429
      %s451 = sphi 0, %s453
      %s454 = sphi 0, %s451
      %s455 = sphi 0, %s454
      %s471 = sphi 0, %s455
    $region4: #{tpu_custom_call.1} parent=1 // loop_header_branch
      %41 = sbr.rel (%p39) target = $region8
    $region5: #{tpu_custom_call.1} parent=1 // loop_body
      %s43 = ssub.s32 %s38, 1
      %s44 = ssub.s32 %s38, 2
      %s45 = sadd.s32 %s38, 1
      %s46 = ssub.s32 %s38, %s45
      %p47 = scmp.eq.s32.totalorder %s46, 0
      %s49 = sadd.s32 %s48, 1
      %s50 = scalar_select %p47, %s48, %s49
      %p53 = pneg %p47
      %p54 = scmp.eq.s32.totalorder %s38, 1
      %p55 = por %p53, %p54
      %p56 = scmp.ne.s32.totalorder %s48, %s51
      %p57 = scmp.eq.s32.totalorder %s38, 0
      %p58 = por %p56, %p57
      %p59 = scmp.ne.s32.totalorder %s48, %s51
      %p60 = scmp.eq.s32.totalorder %s43, 1
      %p61 = por %p59, %p60
      %p62 = scmp.ne.s32.totalorder %s51, %s52
      %p63 = scmp.eq.s32.totalorder %s43, 0
      %p64 = por %p62, %p63
      %p65 = scmp.ne.s32.totalorder %s51, %s52
      %p66 = scmp.eq.s32.totalorder %s44, 1
      %p67 = por %p65, %p66
      %p69 = scmp.ne.s32.totalorder %s52, %s68
      %p70 = scmp.eq.s32.totalorder %s44, 0
      %p71 = por %p69, %p70
      %s72 = ssub.s32 %s38, %s45
      %p73 = scmp.eq.s32.totalorder %s72, 0
      %s75 = sadd.s32 %s74, 1
      %s76 = scalar_select %p73, %s74, %s75
      %p79 = pneg %p73
      %p80 = scmp.eq.s32.totalorder %s38, 1
      %p81 = por %p79, %p80
      %p82 = scmp.ne.s32.totalorder %s74, %s77
      %p83 = scmp.eq.s32.totalorder %s38, 0
      %p84 = por %p82, %p83
      %p85 = scmp.ne.s32.totalorder %s74, %s77
      %p86 = scmp.eq.s32.totalorder %s43, 1
      %p87 = por %p85, %p86
      %p88 = scmp.ne.s32.totalorder %s77, %s78
      %p89 = scmp.eq.s32.totalorder %s43, 0
      %p90 = por %p88, %p89
      %p91 = scmp.ne.s32.totalorder %s77, %s78
      %p92 = scmp.eq.s32.totalorder %s44, 1
      %p93 = por %p91, %p92
      %p95 = scmp.ne.s32.totalorder %s78, %s94
      %p96 = scmp.eq.s32.totalorder %s44, 0
      %p97 = por %p95, %p96
      %s98 = ssub.s32 %s38, %s45
      %p99 = scmp.eq.s32.totalorder %s98, 0
      %s101 = sadd.s32 %s100, 1
      %s102 = scalar_select %p99, %s100, %s101
      %p105 = pneg %p99
      %p106 = scmp.eq.s32.totalorder %s38, 1
      %p107 = por %p105, %p106
      %p108 = scmp.ne.s32.totalorder %s100, %s103
      %p109 = scmp.eq.s32.totalorder %s38, 0
      %p110 = por %p108, %p109
      %p111 = scmp.ne.s32.totalorder %s100, %s103
      %p112 = scmp.eq.s32.totalorder %s43, 1
      %p113 = por %p111, %p112
      %p114 = scmp.ne.s32.totalorder %s103, %s104
      %p115 = scmp.eq.s32.totalorder %s43, 0
      %p116 = por %p114, %p115
      %p117 = scmp.ne.s32.totalorder %s103, %s104
      %p118 = scmp.eq.s32.totalorder %s44, 1
      %p119 = por %p117, %p118
      %p121 = scmp.ne.s32.totalorder %s104, %s120
      %p122 = scmp.eq.s32.totalorder %s44, 0
      %p123 = por %p121, %p122
      %s124 = ssub.s32 %s38, %s45
      %p125 = scmp.eq.s32.totalorder %s124, 0
      %s127 = sadd.s32 %s126, 1
      %s128 = scalar_select %p125, %s126, %s127
      %p131 = pneg %p125
      %p132 = scmp.eq.s32.totalorder %s38, 1
      %p133 = por %p131, %p132
      %p134 = scmp.ne.s32.totalorder %s126, %s129
      %p135 = scmp.eq.s32.totalorder %s38, 0
      %p136 = por %p134, %p135
      %p137 = scmp.ne.s32.totalorder %s126, %s129
      %p138 = scmp.eq.s32.totalorder %s43, 1
      %p139 = por %p137, %p138
      %p140 = scmp.ne.s32.totalorder %s129, %s130
      %p141 = scmp.eq.s32.totalorder %s43, 0
      %p142 = por %p140, %p141
      %p143 = scmp.ne.s32.totalorder %s129, %s130
      %p144 = scmp.eq.s32.totalorder %s44, 1
      %p145 = por %p143, %p144
      %p147 = scmp.ne.s32.totalorder %s130, %s146
      %p148 = scmp.eq.s32.totalorder %s44, 0
      %p149 = por %p147, %p148
      %s151 = sadd.s32 %s150, 1
      %p154 = scmp.eq.s32.totalorder %s38, 1
      %p155 = scmp.ne.s32.totalorder %s150, %s152
      %p156 = scmp.eq.s32.totalorder %s38, 0
      %p157 = por %p155, %p156
      %p158 = scmp.ne.s32.totalorder %s150, %s152
      %p159 = scmp.eq.s32.totalorder %s43, 1
      %p160 = por %p158, %p159
      %p161 = scmp.ne.s32.totalorder %s152, %s153
      %p162 = scmp.eq.s32.totalorder %s43, 0
      %p163 = por %p161, %p162
      %p164 = scmp.ne.s32.totalorder %s152, %s153
      %p165 = scmp.eq.s32.totalorder %s44, 1
      %p166 = por %p164, %p165
      %p168 = scmp.ne.s32.totalorder %s153, %s167
      %p169 = scmp.eq.s32.totalorder %s44, 0
      %p170 = por %p168, %p169
      %s172 = sadd.s32 %s171, 1
      %p175 = scmp.eq.s32.totalorder %s38, 1
      %p176 = scmp.ne.s32.totalorder %s171, %s173
      %p177 = scmp.eq.s32.totalorder %s38, 0
      %p178 = por %p176, %p177
      %p179 = scmp.ne.s32.totalorder %s171, %s173
      %p180 = scmp.eq.s32.totalorder %s43, 1
      %p181 = por %p179, %p180
      %p182 = scmp.ne.s32.totalorder %s173, %s174
      %p183 = scmp.eq.s32.totalorder %s43, 0
      %p184 = por %p182, %p183
      %p185 = scmp.ne.s32.totalorder %s173, %s174
      %p186 = scmp.eq.s32.totalorder %s44, 1
      %p187 = por %p185, %p186
      %p189 = scmp.ne.s32.totalorder %s174, %s188
      %p190 = scmp.eq.s32.totalorder %s44, 0
      %p191 = por %p189, %p190
      %s193 = sadd.s32 %s192, 1
      %p196 = scmp.eq.s32.totalorder %s38, 1
      %p197 = scmp.ne.s32.totalorder %s192, %s194
      %p198 = scmp.eq.s32.totalorder %s38, 0
      %p199 = por %p197, %p198
      %p200 = scmp.ne.s32.totalorder %s192, %s194
      %p201 = scmp.eq.s32.totalorder %s43, 1
      %p202 = por %p200, %p201
      %p203 = scmp.ne.s32.totalorder %s194, %s195
      %p204 = scmp.eq.s32.totalorder %s43, 0
      %p205 = por %p203, %p204
      %p206 = scmp.ne.s32.totalorder %s194, %s195
      %p207 = scmp.eq.s32.totalorder %s44, 1
      %p208 = por %p206, %p207
      %p210 = scmp.ne.s32.totalorder %s195, %s209
      %p211 = scmp.eq.s32.totalorder %s44, 0
      %p212 = por %p210, %p211
      %s214 = sadd.s32 %s213, 1
      %p217 = scmp.eq.s32.totalorder %s38, 1
      %p218 = scmp.ne.s32.totalorder %s213, %s215
      %p219 = scmp.eq.s32.totalorder %s38, 0
      %p220 = por %p218, %p219
      %p221 = scmp.ne.s32.totalorder %s213, %s215
      %p222 = scmp.eq.s32.totalorder %s43, 1
      %p223 = por %p221, %p222
      %p224 = scmp.ne.s32.totalorder %s215, %s216
      %p225 = scmp.eq.s32.totalorder %s43, 0
      %p226 = por %p224, %p225
      %p227 = scmp.ne.s32.totalorder %s215, %s216
      %p228 = scmp.eq.s32.totalorder %s44, 1
      %p229 = por %p227, %p228
      %p231 = scmp.ne.s32.totalorder %s216, %s230
      %p232 = scmp.eq.s32.totalorder %s44, 0
      %p233 = por %p231, %p232
      %s235 = sadd.s32 %s234, 1
      %p238 = scmp.eq.s32.totalorder %s38, 1
      %p239 = scmp.ne.s32.totalorder %s234, %s236
      %p240 = scmp.eq.s32.totalorder %s38, 0
      %p241 = por %p239, %p240
      %p242 = scmp.ne.s32.totalorder %s234, %s236
      %p243 = scmp.eq.s32.totalorder %s43, 1
      %p244 = por %p242, %p243
      %p245 = scmp.ne.s32.totalorder %s236, %s237
      %p246 = scmp.eq.s32.totalorder %s43, 0
      %p247 = por %p245, %p246
      %p248 = scmp.ne.s32.totalorder %s236, %s237
      %p249 = scmp.eq.s32.totalorder %s44, 1
      %p250 = por %p248, %p249
      %p252 = scmp.ne.s32.totalorder %s237, %s251
      %p253 = scmp.eq.s32.totalorder %s44, 0
      %p254 = por %p252, %p253
      %s256 = sadd.s32 %s255, 1
      %p259 = scmp.eq.s32.totalorder %s38, 1
      %p260 = scmp.ne.s32.totalorder %s255, %s257
      %p261 = scmp.eq.s32.totalorder %s38, 0
      %p262 = por %p260, %p261
      %p263 = scmp.ne.s32.totalorder %s255, %s257
      %p264 = scmp.eq.s32.totalorder %s43, 1
      %p265 = por %p263, %p264
      %p266 = scmp.ne.s32.totalorder %s257, %s258
      %p267 = scmp.eq.s32.totalorder %s43, 0
      %p268 = por %p266, %p267
      %p269 = scmp.ne.s32.totalorder %s257, %s258
      %p270 = scmp.eq.s32.totalorder %s44, 1
      %p271 = por %p269, %p270
      %p273 = scmp.ne.s32.totalorder %s258, %s272
      %p274 = scmp.eq.s32.totalorder %s44, 0
      %p275 = por %p273, %p274
      %s277 = sadd.s32 %s276, 1
      %p280 = scmp.eq.s32.totalorder %s38, 1
      %p281 = scmp.ne.s32.totalorder %s276, %s278
      %p282 = scmp.eq.s32.totalorder %s38, 0
      %p283 = por %p281, %p282
      %p284 = scmp.ne.s32.totalorder %s276, %s278
      %p285 = scmp.eq.s32.totalorder %s43, 1
      %p286 = por %p284, %p285
      %p287 = scmp.ne.s32.totalorder %s278, %s279
      %p288 = scmp.eq.s32.totalorder %s43, 0
      %p289 = por %p287, %p288
      %p290 = scmp.ne.s32.totalorder %s278, %s279
      %p291 = scmp.eq.s32.totalorder %s44, 1
      %p292 = por %p290, %p291
      %p294 = scmp.ne.s32.totalorder %s279, %s293
      %p295 = scmp.eq.s32.totalorder %s44, 0
      %p296 = por %p294, %p295
      %s298 = sadd.s32 %s297, 1
      %p301 = scmp.eq.s32.totalorder %s38, 1
      %p302 = scmp.ne.s32.totalorder %s297, %s299
      %p303 = scmp.eq.s32.totalorder %s38, 0
      %p304 = por %p302, %p303
      %p305 = scmp.ne.s32.totalorder %s297, %s299
      %p306 = scmp.eq.s32.totalorder %s43, 1
      %p307 = por %p305, %p306
      %p308 = scmp.ne.s32.totalorder %s299, %s300
      %p309 = scmp.eq.s32.totalorder %s43, 0
      %p310 = por %p308, %p309
      %p311 = scmp.ne.s32.totalorder %s299, %s300
      %p312 = scmp.eq.s32.totalorder %s44, 1
      %p313 = por %p311, %p312
      %p315 = scmp.ne.s32.totalorder %s300, %s314
      %p316 = scmp.eq.s32.totalorder %s44, 0
      %p317 = por %p315, %p316
      %s319 = sadd.s32 %s318, 1
      %p322 = scmp.eq.s32.totalorder %s38, 1
      %p323 = scmp.ne.s32.totalorder %s318, %s320
      %p324 = scmp.eq.s32.totalorder %s38, 0
      %p325 = por %p323, %p324
      %p326 = scmp.ne.s32.totalorder %s318, %s320
      %p327 = scmp.eq.s32.totalorder %s43, 1
      %p328 = por %p326, %p327
      %p329 = scmp.ne.s32.totalorder %s320, %s321
      %p330 = scmp.eq.s32.totalorder %s43, 0
      %p331 = por %p329, %p330
      %p332 = scmp.ne.s32.totalorder %s320, %s321
      %p333 = scmp.eq.s32.totalorder %s44, 1
      %p334 = por %p332, %p333
      %p336 = scmp.ne.s32.totalorder %s321, %s335
      %p337 = scmp.eq.s32.totalorder %s44, 0
      %p338 = por %p336, %p337
      %s340 = sadd.s32 %s339, 1
      %p343 = scmp.eq.s32.totalorder %s38, 1
      %p344 = scmp.ne.s32.totalorder %s339, %s341
      %p345 = scmp.eq.s32.totalorder %s38, 0
      %p346 = por %p344, %p345
      %p347 = scmp.ne.s32.totalorder %s339, %s341
      %p348 = scmp.eq.s32.totalorder %s43, 1
      %p349 = por %p347, %p348
      %p350 = scmp.ne.s32.totalorder %s341, %s342
      %p351 = scmp.eq.s32.totalorder %s43, 0
      %p352 = por %p350, %p351
      %p353 = scmp.ne.s32.totalorder %s341, %s342
      %p354 = scmp.eq.s32.totalorder %s44, 1
      %p355 = por %p353, %p354
      %p357 = scmp.ne.s32.totalorder %s342, %s356
      %p358 = scmp.eq.s32.totalorder %s44, 0
      %p359 = por %p357, %p358
      %s361 = sadd.s32 %s360, 1
      %p364 = scmp.eq.s32.totalorder %s38, 1
      %p365 = scmp.ne.s32.totalorder %s360, %s362
      %p366 = scmp.eq.s32.totalorder %s38, 0
      %p367 = por %p365, %p366
      %p368 = scmp.ne.s32.totalorder %s360, %s362
      %p369 = scmp.eq.s32.totalorder %s43, 1
      %p370 = por %p368, %p369
      %p371 = scmp.ne.s32.totalorder %s362, %s363
      %p372 = scmp.eq.s32.totalorder %s43, 0
      %p373 = por %p371, %p372
      %p374 = scmp.ne.s32.totalorder %s362, %s363
      %p375 = scmp.eq.s32.totalorder %s44, 1
      %p376 = por %p374, %p375
      %p378 = scmp.ne.s32.totalorder %s363, %s377
      %p379 = scmp.eq.s32.totalorder %s44, 0
      %p380 = por %p378, %p379
      %s382 = sadd.s32 %s381, 1
      %p385 = scmp.eq.s32.totalorder %s38, 1
      %p386 = scmp.ne.s32.totalorder %s381, %s383
      %p387 = scmp.eq.s32.totalorder %s38, 0
      %p388 = por %p386, %p387
      %p389 = scmp.ne.s32.totalorder %s381, %s383
      %p390 = scmp.eq.s32.totalorder %s43, 1
      %p391 = por %p389, %p390
      %p392 = scmp.ne.s32.totalorder %s383, %s384
      %p393 = scmp.eq.s32.totalorder %s43, 0
      %p394 = por %p392, %p393
      %p395 = scmp.ne.s32.totalorder %s383, %s384
      %p396 = scmp.eq.s32.totalorder %s44, 1
      %p397 = por %p395, %p396
      %p399 = scmp.ne.s32.totalorder %s384, %s398
      %p400 = scmp.eq.s32.totalorder %s44, 0
      %p401 = por %p399, %p400
      %s403 = sadd.s32 %s402, 1
      %p406 = scmp.eq.s32.totalorder %s38, 1
      %p407 = scmp.ne.s32.totalorder %s402, %s404
      %p408 = scmp.eq.s32.totalorder %s38, 0
      %p409 = por %p407, %p408
      %p410 = scmp.ne.s32.totalorder %s402, %s404
      %p411 = scmp.eq.s32.totalorder %s43, 1
      %p412 = por %p410, %p411
      %p413 = scmp.ne.s32.totalorder %s404, %s405
      %p414 = scmp.eq.s32.totalorder %s43, 0
      %p415 = por %p413, %p414
      %p416 = scmp.ne.s32.totalorder %s404, %s405
      %p417 = scmp.eq.s32.totalorder %s44, 1
      %p418 = por %p416, %p417
      %p420 = scmp.ne.s32.totalorder %s405, %s419
      %p421 = scmp.eq.s32.totalorder %s44, 0
      %p422 = por %p420, %p421
      %s423 = ssub.s32 %s38, %s45
      %p424 = scmp.eq.s32.totalorder %s423, 0
      %s426 = sadd.s32 %s425, 1
      %s427 = scalar_select %p424, %s425, %s426
      %p430 = pneg %p424
      %p431 = scmp.eq.s32.totalorder %s38, 1
      %p432 = por %p430, %p431
      %p433 = scmp.ne.s32.totalorder %s425, %s428
      %p434 = scmp.eq.s32.totalorder %s38, 0
      %p435 = por %p433, %p434
      %p436 = scmp.ne.s32.totalorder %s425, %s428
      %p437 = scmp.eq.s32.totalorder %s43, 1
      %p438 = por %p436, %p437
      %p439 = scmp.ne.s32.totalorder %s428, %s429
      %p440 = scmp.eq.s32.totalorder %s43, 0
      %p441 = por %p439, %p440
      %p442 = scmp.ne.s32.totalorder %s428, %s429
      %p443 = scmp.eq.s32.totalorder %s44, 1
      %p444 = por %p442, %p443
      %p446 = scmp.ne.s32.totalorder %s429, %s445
      %p447 = scmp.eq.s32.totalorder %s44, 0
      %p448 = por %p446, %p447
      %s449 = ssub.s32 %s38, %s45
      %p450 = scmp.eq.s32.totalorder %s449, 0
      %s452 = sadd.s32 %s451, 1
      %s453 = scalar_select %p450, %s451, %s452
      %p456 = pneg %p450
      %p457 = scmp.eq.s32.totalorder %s38, 1
      %p458 = por %p456, %p457
      %p459 = scmp.ne.s32.totalorder %s451, %s454
      %p460 = scmp.eq.s32.totalorder %s38, 0
      %p461 = por %p459, %p460
      %p462 = scmp.ne.s32.totalorder %s451, %s454
      %p463 = scmp.eq.s32.totalorder %s43, 1
      %p464 = por %p462, %p463
      %p465 = scmp.ne.s32.totalorder %s454, %s455
      %p466 = scmp.eq.s32.totalorder %s43, 0
      %p467 = por %p465, %p466
      %p468 = scmp.ne.s32.totalorder %s454, %s455
      %p469 = scmp.eq.s32.totalorder %s44, 1
      %p470 = por %p468, %p469
      %p472 = scmp.ne.s32.totalorder %s455, %s471
      %p473 = scmp.eq.s32.totalorder %s44, 0
      %p474 = por %p472, %p473
      %p475 = scmp.le.s32.totalorder 1, %s38
      %p476 = scmp.lt.s32.totalorder %s38, 3
      %p477 = pnand %p475, %p476
      %p478 = pneg %p477
      // Predicated region
      $region9: #{tpu_custom_call.1} parent=5 // pred_check
        _
      $region10: #{tpu_custom_call.1} parent=5 // pred_check_branch
        %480 = sbr.rel (%p477) target = $region12
      $region11: #{tpu_custom_call.1} parent=5 // pred_region
        %s481 = ssub.s32 %s38, 1
        // Predicated region
        $region13: #{tpu_custom_call.1} parent=11 // pred_check
          %p482 = pneg %p163
        $region14: #{tpu_custom_call.1} parent=11 // pred_check_branch
          %484 = sbr.rel (%p482) target = $region16
        $region15: #{tpu_custom_call.1} parent=11 // pred_region
          _
        $region16: #{tpu_custom_call.1} parent=11 // pred_fallthru
          _
        // Predicated region
        $region17: #{tpu_custom_call.1} parent=11 // pred_check
          %p485 = pneg %p184
        $region18: #{tpu_custom_call.1} parent=11 // pred_check_branch
          %487 = sbr.rel (%p485) target = $region20
        $region19: #{tpu_custom_call.1} parent=11 // pred_region
          _
        $region20: #{tpu_custom_call.1} parent=11 // pred_fallthru
          _
        // Predicated region
        $region21: #{tpu_custom_call.1} parent=11 // pred_check
          %p488 = pneg %p205
        $region22: #{tpu_custom_call.1} parent=11 // pred_check_branch
          %490 = sbr.rel (%p488) target = $region24
        $region23: #{tpu_custom_call.1} parent=11 // pred_region
          _
        $region24: #{tpu_custom_call.1} parent=11 // pred_fallthru
          _
        // Predicated region
        $region25: #{tpu_custom_call.1} parent=11 // pred_check
          %p491 = pneg %p226
        $region26: #{tpu_custom_call.1} parent=11 // pred_check_branch
          %493 = sbr.rel (%p491) target = $region28
        $region27: #{tpu_custom_call.1} parent=11 // pred_region
          _
        $region28: #{tpu_custom_call.1} parent=11 // pred_fallthru
          _
        // Predicated region
        $region29: #{tpu_custom_call.1} parent=11 // pred_check
          %p494 = pneg %p247
        $region30: #{tpu_custom_call.1} parent=11 // pred_check_branch
          %496 = sbr.rel (%p494) target = $region32
        $region31: #{tpu_custom_call.1} parent=11 // pred_region
          %498 = vsyncadd [#allocation9], 0
          %s499 = sshll.u32 %s8, 4
          %s500 = int_to_ptr.hbm [resolvable:$true] %s499
          %s501 = sshll.u32 [#allocation10], 4
          %s502 = int_to_ptr.vmem [resolvable:$true] %s501
          %507 = dma.hbm_to_vmem [thread:$0]  %s500, 512, %s502, [#allocation9], 128, 128, 8
        $region32: #{tpu_custom_call.1} parent=11 // pred_fallthru
          _
        // Predicated region
        $region33: #{tpu_custom_call.1} parent=11 // pred_check
          %p508 = pneg %p268
        $region34: #{tpu_custom_call.1} parent=11 // pred_check_branch
          %510 = sbr.rel (%p508) target = $region36
        $region35: #{tpu_custom_call.1} parent=11 // pred_region
          _
        $region36: #{tpu_custom_call.1} parent=11 // pred_fallthru
          _
        // Predicated region
        $region37: #{tpu_custom_call.1} parent=11 // pred_check
          %p511 = pneg %p289
        $region38: #{tpu_custom_call.1} parent=11 // pred_check_branch
          %513 = sbr.rel (%p511) target = $region40
        $region39: #{tpu_custom_call.1} parent=11 // pred_region
          _
        $region40: #{tpu_custom_call.1} parent=11 // pred_fallthru
          _
        // Predicated region
        $region41: #{tpu_custom_call.1} parent=11 // pred_check
          %p514 = pneg %p310
        $region42: #{tpu_custom_call.1} parent=11 // pred_check_branch
          %516 = sbr.rel (%p514) target = $region44
        $region43: #{tpu_custom_call.1} parent=11 // pred_region
          _
        $region44: #{tpu_custom_call.1} parent=11 // pred_fallthru
          _
        // Predicated region
        $region45: #{tpu_custom_call.1} parent=11 // pred_check
          %p517 = pneg %p331
        $region46: #{tpu_custom_call.1} parent=11 // pred_check_branch
          %519 = sbr.rel (%p517) target = $region48
        $region47: #{tpu_custom_call.1} parent=11 // pred_region
          _
        $region48: #{tpu_custom_call.1} parent=11 // pred_fallthru
          _
        // Predicated region
        $region49: #{tpu_custom_call.1} parent=11 // pred_check
          %p520 = pneg %p352
        $region50: #{tpu_custom_call.1} parent=11 // pred_check_branch
          %522 = sbr.rel (%p520) target = $region52
        $region51: #{tpu_custom_call.1} parent=11 // pred_region
          _
        $region52: #{tpu_custom_call.1} parent=11 // pred_fallthru
          _
        // Predicated region
        $region53: #{tpu_custom_call.1} parent=11 // pred_check
          %p523 = pneg %p373
        $region54: #{tpu_custom_call.1} parent=11 // pred_check_branch
          %525 = sbr.rel (%p523) target = $region56
        $region55: #{tpu_custom_call.1} parent=11 // pred_region
          %527 = vsyncadd [#allocation12], 0
          %s528 = sshll.u32 %s14, 4
          %s529 = int_to_ptr.hbm [resolvable:$true] %s528
          %s530 = sshll.u32 [#allocation11], 4
          %s531 = int_to_ptr.vmem [resolvable:$true] %s530
          %536 = dma.hbm_to_vmem [thread:$0]  %s529, 512, %s531, [#allocation12], 128, 128, 8
        $region56: #{tpu_custom_call.1} parent=11 // pred_fallthru
          _
        // Predicated region
        $region57: #{tpu_custom_call.1} parent=11 // pred_check
          %p537 = pneg %p394
        $region58: #{tpu_custom_call.1} parent=11 // pred_check_branch
          %539 = sbr.rel (%p537) target = $region60
        $region59: #{tpu_custom_call.1} parent=11 // pred_region
          %541 = vsyncadd [#allocation12], 0
          %s542 = sshll.u32 %s15, 4
          %s543 = int_to_ptr.hbm [resolvable:$true] %s542
          %s544 = sshll.u32 [#allocation13], 4
          %s545 = int_to_ptr.vmem [resolvable:$true] %s544
          %550 = dma.hbm_to_vmem [thread:$0]  %s543, 512, %s545, [#allocation12], 128, 128, 8
        $region60: #{tpu_custom_call.1} parent=11 // pred_fallthru
          _
        // Predicated region
        $region61: #{tpu_custom_call.1} parent=11 // pred_check
          %p551 = pneg %p415
        $region62: #{tpu_custom_call.1} parent=11 // pred_check_branch
          %553 = sbr.rel (%p551) target = $region64
        $region63: #{tpu_custom_call.1} parent=11 // pred_region
          _
        $region64: #{tpu_custom_call.1} parent=11 // pred_fallthru
          _
      $region12: #{tpu_custom_call.1} parent=5 // pred_fallthru
        _
      %p554 = scmp.lt.s32.totalorder %s38, 2
      // Predicated region
      $region65: #{tpu_custom_call.1} parent=5 // pred_check
        %p555 = pneg %p554
      $region66: #{tpu_custom_call.1} parent=5 // pred_check_branch
        %557 = sbr.rel (%p555) target = $region68
      $region67: #{tpu_custom_call.1} parent=5 // pred_region
        // Predicated region
        $region69: #{tpu_custom_call.1} parent=67 // pred_check
          %p558 = pneg %p58
        $region70: #{tpu_custom_call.1} parent=67 // pred_check_branch
          %560 = sbr.rel (%p558) target = $region72
        $region71: #{tpu_custom_call.1} parent=67 // pred_region
          %s561 = sand.u32 %s48, 1
          %s562 = scalar_lea.sflag [#allocation3], %s561
          %s563 = sand.u32 %s48, 1
          %s564 = smul.addr %s563, 8
          %s565 = scalar_lea.vmem [#allocation2], %s564
          %567 = vsyncadd %s562, 0
          %s568 = smul.addr %s38, 8
          %s569 = scalar_lea.hbm %s0, %s568
          %s571 = sshll.u32 %s569, 4
          %s572 = int_to_ptr.hbm [resolvable:$true] %s571
          %s573 = sshll.u32 %s565, 4
          %s574 = int_to_ptr.vmem [resolvable:$true] %s573
          %576 = dma.hbm_to_vmem [thread:$0]  %s572, 128, %s574, %s562
        $region72: #{tpu_custom_call.1} parent=67 // pred_fallthru
          _
        // Predicated region
        $region73: #{tpu_custom_call.1} parent=67 // pred_check
          %p577 = pneg %p84
        $region74: #{tpu_custom_call.1} parent=67 // pred_check_branch
          %579 = sbr.rel (%p577) target = $region76
        $region75: #{tpu_custom_call.1} parent=67 // pred_region
          %s580 = sand.u32 %s38, 1
          %s581 = scalar_lea.sflag [#allocation6], %s580
          %s582 = sand.u32 %s74, 1
          %s583 = smul.addr %s582, 8
          %s584 = scalar_lea.vmem [#allocation5], %s583
          %586 = vsyncadd %s581, 0
          %s587 = smul.addr %s38, 8
          %s588 = scalar_lea.hbm %s1, %s587
          %s590 = sshll.u32 %s588, 4
          %s591 = int_to_ptr.hbm [resolvable:$true] %s590
          %s592 = sshll.u32 %s584, 4
          %s593 = int_to_ptr.vmem [resolvable:$true] %s592
          %595 = dma.hbm_to_vmem [thread:$0]  %s591, 128, %s593, %s581
        $region76: #{tpu_custom_call.1} parent=67 // pred_fallthru
          _
        // Predicated region
        $region77: #{tpu_custom_call.1} parent=67 // pred_check
          %p596 = pneg %p110
        $region78: #{tpu_custom_call.1} parent=67 // pred_check_branch
          %598 = sbr.rel (%p596) target = $region80
        $region79: #{tpu_custom_call.1} parent=67 // pred_region
          %s599 = sand.u32 %s38, 1
          %s600 = scalar_lea.sflag [#allocation6], %s599
          %s601 = sand.u32 %s100, 1
          %s602 = smul.addr %s601, 8
          %s603 = scalar_lea.vmem [#allocation7], %s602
          %605 = vsyncadd %s600, 0
          %s606 = smul.addr %s38, 8
          %s607 = scalar_lea.hbm %s2, %s606
          %s609 = sshll.u32 %s607, 4
          %s610 = int_to_ptr.hbm [resolvable:$true] %s609
          %s611 = sshll.u32 %s603, 4
          %s612 = int_to_ptr.vmem [resolvable:$true] %s611
          %614 = dma.hbm_to_vmem [thread:$0]  %s610, 128, %s612, %s600
        $region80: #{tpu_custom_call.1} parent=67 // pred_fallthru
          _
        // Predicated region
        $region81: #{tpu_custom_call.1} parent=67 // pred_check
          %p615 = pneg %p136
        $region82: #{tpu_custom_call.1} parent=67 // pred_check_branch
          %617 = sbr.rel (%p615) target = $region84
        $region83: #{tpu_custom_call.1} parent=67 // pred_region
          %s618 = sand.u32 %s38, 1
          %s619 = scalar_lea.sflag [#allocation9], %s618
          %s620 = sand.u32 %s126, 1
          %s621 = smul.addr %s620, 8
          %s622 = scalar_lea.vmem [#allocation8], %s621
          %624 = vsyncadd %s619, 0
          %s625 = smul.addr %s38, 8
          %s626 = scalar_lea.hbm %s3, %s625
          %s628 = sshll.u32 %s626, 4
          %s629 = int_to_ptr.hbm [resolvable:$true] %s628
          %s630 = sshll.u32 %s622, 4
          %s631 = int_to_ptr.vmem [resolvable:$true] %s630
          %633 = dma.hbm_to_vmem [thread:$0]  %s629, 128, %s631, %s619
        $region84: #{tpu_custom_call.1} parent=67 // pred_fallthru
          _
      $region68: #{tpu_custom_call.1} parent=5 // pred_fallthru
        _
      %p634 = scmp.le.s32.totalorder 1, %s38
      %p635 = scmp.lt.s32.totalorder %s38, 3
      %p636 = pnand %p634, %p635
      %p637 = pneg %p636
      // Predicated region
      $region85: #{tpu_custom_call.1} parent=5 // pred_check
        _
      $region86: #{tpu_custom_call.1} parent=5 // pred_check_branch
        %639 = sbr.rel (%p636) target = $region88
      $region87: #{tpu_custom_call.1} parent=5 // pred_region
        %s640 = ssub.s32 %s38, 1
        %s641 = sand.u32 %s51, 1
        %s642 = scalar_lea.sflag [#allocation3], %s641
        %s643 = sand.u32 %s51, 1
        %s644 = smul.addr %s643, 8
        %s645 = scalar_lea.vmem [#allocation2], %s644
        // Predicated region
        $region89: #{tpu_custom_call.1} parent=87 // pred_check
          %p646 = pneg %p64
        $region90: #{tpu_custom_call.1} parent=87 // pred_check_branch
          %648 = sbr.rel (%p646) target = $region92
        $region91: #{tpu_custom_call.1} parent=87 // pred_region
          %650 = dma.done %s642, 128
        $region92: #{tpu_custom_call.1} parent=87 // pred_fallthru
          _
        %s651 = sand.u32 %s43, 1
        %s652 = scalar_lea.sflag [#allocation6], %s651
        %s653 = sand.u32 %s77, 1
        %s654 = smul.addr %s653, 8
        %s655 = scalar_lea.vmem [#allocation5], %s654
        // Predicated region
        $region93: #{tpu_custom_call.1} parent=87 // pred_check
          %p656 = pneg %p90
        $region94: #{tpu_custom_call.1} parent=87 // pred_check_branch
          %658 = sbr.rel (%p656) target = $region96
        $region95: #{tpu_custom_call.1} parent=87 // pred_region
          %660 = dma.done %s652, 128
        $region96: #{tpu_custom_call.1} parent=87 // pred_fallthru
          _
        %s661 = sand.u32 %s43, 1
        %s662 = scalar_lea.sflag [#allocation6], %s661
        %s663 = sand.u32 %s103, 1
        %s664 = smul.addr %s663, 8
        %s665 = scalar_lea.vmem [#allocation7], %s664
        // Predicated region
        $region97: #{tpu_custom_call.1} parent=87 // pred_check
          %p666 = pneg %p116
        $region98: #{tpu_custom_call.1} parent=87 // pred_check_branch
          %668 = sbr.rel (%p666) target = $region100
        $region99: #{tpu_custom_call.1} parent=87 // pred_region
          %670 = dma.done %s662, 128
        $region100: #{tpu_custom_call.1} parent=87 // pred_fallthru
          _
        %s671 = sand.u32 %s43, 1
        %s672 = scalar_lea.sflag [#allocation9], %s671
        %s673 = sand.u32 %s129, 1
        %s674 = smul.addr %s673, 8
        %s675 = scalar_lea.vmem [#allocation8], %s674
        // Predicated region
        $region101: #{tpu_custom_call.1} parent=87 // pred_check
          %p676 = pneg %p142
        $region102: #{tpu_custom_call.1} parent=87 // pred_check_branch
          %678 = sbr.rel (%p676) target = $region104
        $region103: #{tpu_custom_call.1} parent=87 // pred_region
          %680 = dma.done %s672, 128
        $region104: #{tpu_custom_call.1} parent=87 // pred_fallthru
          _
        // Predicated region
        $region105: #{tpu_custom_call.1} parent=87 // pred_check
          %p681 = pneg %p247
        $region106: #{tpu_custom_call.1} parent=87 // pred_check_branch
          %683 = sbr.rel (%p681) target = $region108
        $region107: #{tpu_custom_call.1} parent=87 // pred_region
          %685 = dma.done [#allocation9], 512
        $region108: #{tpu_custom_call.1} parent=87 // pred_fallthru
          _
        // Predicated region
        $region109: #{tpu_custom_call.1} parent=87 // pred_check
          %p686 = pneg %p373
        $region110: #{tpu_custom_call.1} parent=87 // pred_check_branch
          %688 = sbr.rel (%p686) target = $region112
        $region111: #{tpu_custom_call.1} parent=87 // pred_region
          %690 = dma.done [#allocation12], 512
        $region112: #{tpu_custom_call.1} parent=87 // pred_fallthru
          _
        // Predicated region
        $region113: #{tpu_custom_call.1} parent=87 // pred_check
          %p691 = pneg %p394
        $region114: #{tpu_custom_call.1} parent=87 // pred_check_branch
          %693 = sbr.rel (%p691) target = $region116
        $region115: #{tpu_custom_call.1} parent=87 // pred_region
          %695 = dma.done [#allocation12], 512
        $region116: #{tpu_custom_call.1} parent=87 // pred_fallthru
          _
        %s696 = sand.u32 %s51, 1
        %s697 = scalar_lea.sflag [#allocation3], %s696
        %s698 = sand.u32 %s51, 1
        %s699 = smul.addr %s698, 8
        %s700 = scalar_lea.vmem [#allocation2], %s699
        %p701 = pneg %p64
        %p702 = pneg %p61
        %s703 = sand.u32 %s43, 1
        %s704 = scalar_lea.sflag [#allocation6], %s703
        %s705 = sand.u32 %s77, 1
        %s706 = smul.addr %s705, 8
        %s707 = scalar_lea.vmem [#allocation5], %s706
        %p708 = pneg %p90
        %p709 = pneg %p87
        %s710 = sand.u32 %s43, 1
        %s711 = scalar_lea.sflag [#allocation6], %s710
        %s712 = sand.u32 %s103, 1
        %s713 = smul.addr %s712, 8
        %s714 = scalar_lea.vmem [#allocation7], %s713
        %p715 = pneg %p116
        %p716 = pneg %p113
        %s717 = sand.u32 %s43, 1
        %s718 = scalar_lea.sflag [#allocation9], %s717
        %s719 = sand.u32 %s129, 1
        %s720 = smul.addr %s719, 8
        %s721 = scalar_lea.vmem [#allocation8], %s720
        %p722 = pneg %p142
        %p723 = pneg %p139
        %p724 = pneg %p163
        %p725 = pneg %p160
        %p726 = pneg %p184
        %p727 = pneg %p181
        %p728 = pneg %p205
        %p729 = pneg %p202
        %p730 = pneg %p226
        %p731 = pneg %p223
        %p732 = pneg %p247
        %p733 = pneg %p244
        %p734 = pneg %p268
        %p735 = pneg %p265
        %p736 = pneg %p289
        %p737 = pneg %p286
        %p738 = pneg %p310
        %p739 = pneg %p307
        %p740 = pneg %p331
        %p741 = pneg %p328
        %p742 = pneg %p352
        %p743 = pneg %p349
        %p744 = pneg %p373
        %p745 = pneg %p370
        %p746 = pneg %p394
        %p747 = pneg %p391
        %p748 = pneg %p415
        %p749 = pneg %p412
        %p750 = pneg %p441
        %p751 = pneg %p438
        %s752 = sand.u32 %s428, 1
        %s753 = scalar_lea.sflag [#allocation4], %s752
        %s754 = sand.u32 %s428, 1
        %s755 = smul.addr %s754, 8
        %s756 = scalar_lea.vmem [#allocation14], %s755
        %p757 = pneg %p467
        %p758 = pneg %p464
        %p759 = scmp.lt.s32.totalorder %s43, 1
        %s760 = scalar_select %p759, %s43, 1
        %s761 = smul.addr %s760, 8
        %s762 = scalar_lea.vmem %s18, %s761
        %p763 = scmp.lt.s32.totalorder %s43, 1
        %s764 = scalar_select %p763, %s43, 1
        %s765 = smul.addr %s764, 8
        %s766 = scalar_lea.vmem %s18, %s765
        %v767 = vld [vmem:[%s645] sm:$0xff]
        %v768 = vld [vmem:[%s655] sm:$0xff]
        %v769 = vld [vmem:[%s665] sm:$0xff]
        %v770 = vld [vmem:[%s675] sm:$0xff]
        %v771 = vld [vmem:[%s4] sm:$0xff]
        %v772 = vld [vmem:[%s4 + $0x8] sm:$0xff]
        %v773 = vld [vmem:[%s4 + $0x10] sm:$0xff]
        %v774 = vld [vmem:[%s4 + $0x18] sm:$0xff]
        %v775 = vld [vmem:[%s5] sm:$0x1]
        %v777 = vperm.slane %v775, 0
        %vm779 = vcmask 261120
        %v781 = vsel %vm779, %v767, 0
        %783 = vmatpush.msra.mxu0 0.0
        %784 = vmatpush.msra.mxu0 0.0
        %785 = vmatpush.msra.mxu0 0.0
        %786 = vmatpush.msra.mxu0 0.0
        %787 = vmatpush.msra.mxu0 0.0
        %788 = vmatpush.msra.mxu0 0.0
        %789 = vmatpush.msra.mxu0 0.0
        %790 = vmatpush.msra.mxu0 0.0
        %791 = vmatpush.msra.mxu0 0.0
        %792 = vmatpush.msra.mxu0 0.0
        %793 = vmatpush.msra.mxu0 0.0
        %794 = vmatpush.msra.mxu0 0.0
        %795 = vmatpush.msra.mxu0 %v774
        %796 = vmatpush.msra.mxu0 %v773
        %797 = vmatpush.msra.mxu0 %v772
        %798 = vmatpush.msra.mxu0 %v771
        %799 = vmatmul.f32.gmra.mxu0 %v781
        %v800 = vpop.f32.mrf.mxu0
        %v801 = vadd.f32 %v777, %v800
        %802 = vdwg.mxu0
        %v803 = vmul.f32 %v801, 0.35355338
        %v804 = vld [vmem:[%s6] sm:$0xff]
        %v805 = vld [vmem:[%s6 + $0x8] sm:$0xff]
        %v806 = vld [vmem:[%s6 + $0x10] sm:$0xff]
        %v807 = vld [vmem:[%s6 + $0x18] sm:$0xff]
        %v808 = vld [vmem:[%s7] sm:$0x1]
        %v810 = vperm.slane %v808, 0
        %v813 = vsel %vm779, %v768, 0
        %815 = vmatpush.msra.mxu0 0.0
        %816 = vmatpush.msra.mxu0 0.0
        %817 = vmatpush.msra.mxu0 0.0
        %818 = vmatpush.msra.mxu0 0.0
        %819 = vmatpush.msra.mxu0 0.0
        %820 = vmatpush.msra.mxu0 0.0
        %821 = vmatpush.msra.mxu0 0.0
        %822 = vmatpush.msra.mxu0 0.0
        %823 = vmatpush.msra.mxu0 0.0
        %824 = vmatpush.msra.mxu0 0.0
        %825 = vmatpush.msra.mxu0 0.0
        %826 = vmatpush.msra.mxu0 0.0
        %827 = vmatpush.msra.mxu0 %v807
        %828 = vmatpush.msra.mxu0 %v806
        %829 = vmatpush.msra.mxu0 %v805
        %830 = vmatpush.msra.mxu0 %v804
        %831 = vmatmul.f32.gmra.mxu0 %v813
        %v832 = vpop.f32.mrf.mxu0
        %v833 = vadd.f32 %v810, %v832
        %834 = vdwg.mxu0
        %v835 = vld [vmem:[#allocation10] sm:$0xff]
        %v836 = vld [vmem:[#allocation10 + $0x8] sm:$0xff]
        %v837 = vld [vmem:[#allocation10 + $0x10] sm:$0xff]
        %v838 = vld [vmem:[#allocation10 + $0x18] sm:$0xff]
        %v839 = vld [vmem:[%s9] sm:$0x1]
        %v841 = vperm.slane %v839, 0
        %v844 = vsel %vm779, %v769, 0
        %846 = vmatpush.msra.mxu0 0.0
        %847 = vmatpush.msra.mxu0 0.0
        %848 = vmatpush.msra.mxu0 0.0
        %849 = vmatpush.msra.mxu0 0.0
        %850 = vmatpush.msra.mxu0 0.0
        %851 = vmatpush.msra.mxu0 0.0
        %852 = vmatpush.msra.mxu0 0.0
        %853 = vmatpush.msra.mxu0 0.0
        %854 = vmatpush.msra.mxu0 0.0
        %855 = vmatpush.msra.mxu0 0.0
        %856 = vmatpush.msra.mxu0 0.0
        %857 = vmatpush.msra.mxu0 0.0
        %858 = vmatpush.msra.mxu0 %v838
        %859 = vmatpush.msra.mxu0 %v837
        %860 = vmatpush.msra.mxu0 %v836
        %861 = vmatpush.msra.mxu0 %v835
        %862 = vmatmul.f32.gmra.mxu0 %v844
        %v863 = vpop.f32.mrf.mxu0
        %v864 = vadd.f32 %v841, %v863
        %865 = vdwg.mxu0
        %v866 = vld [vmem:[%s10] sm:$0xff]
        %v867 = vld [vmem:[%s10 + $0x8] sm:$0xff]
        %v868 = vld [vmem:[%s10 + $0x10] sm:$0xff]
        %v869 = vld [vmem:[%s10 + $0x18] sm:$0xff]
        %v870 = vld [vmem:[%s10 + $0x20] sm:$0xff]
        %v871 = vld [vmem:[%s10 + $0x28] sm:$0xff]
        %v872 = vld [vmem:[%s10 + $0x30] sm:$0xff]
        %v873 = vld [vmem:[%s10 + $0x38] sm:$0xff]
        %v874 = vld [vmem:[%s11] sm:$0x3]
        %v876 = vperm.slane %v874, 0
        %v877 = vperm.slane %v874, 1
        %v881 = vsel %vm779, %v770, 0
        %883 = vmatpush.msra.mxu0 0.0
        %884 = vmatpush.msra.mxu0 0.0
        %885 = vmatpush.msra.mxu0 0.0
        %886 = vmatpush.msra.mxu0 0.0
        %887 = vmatpush.msra.mxu0 0.0
        %888 = vmatpush.msra.mxu0 0.0
        %889 = vmatpush.msra.mxu0 0.0
        %890 = vmatpush.msra.mxu0 0.0
        %891 = vmatpush.msra.mxu0 0.0
        %892 = vmatpush.msra.mxu0 0.0
        %893 = vmatpush.msra.mxu0 0.0
        %894 = vmatpush.msra.mxu0 0.0
        %895 = vmatpush.msra.mxu0 %v872
        %896 = vmatpush.msra.mxu0 %v870
        %897 = vmatpush.msra.mxu0 %v868
        %898 = vmatpush.msra.mxu0 %v866
        %899 = vmatmul.f32.gmra.mxu0 %v881
        %v900 = vpop.f32.mrf.mxu0
        %v901 = vadd.f32 %v876, %v900
        %902 = vdwg.mxu0
        %903 = vmatpush.msra.mxu0 0.0
        %904 = vmatpush.msra.mxu0 0.0
        %905 = vmatpush.msra.mxu0 0.0
        %906 = vmatpush.msra.mxu0 0.0
        %907 = vmatpush.msra.mxu0 0.0
        %908 = vmatpush.msra.mxu0 0.0
        %909 = vmatpush.msra.mxu0 0.0
        %910 = vmatpush.msra.mxu0 0.0
        %911 = vmatpush.msra.mxu0 0.0
        %912 = vmatpush.msra.mxu0 0.0
        %913 = vmatpush.msra.mxu0 0.0
        %914 = vmatpush.msra.mxu0 0.0
        %915 = vmatpush.msra.mxu0 %v873
        %916 = vmatpush.msra.mxu0 %v871
        %917 = vmatpush.msra.mxu0 %v869
        %918 = vmatpush.msra.mxu0 %v867
        %919 = vmatmul.f32.gmra.mxu0 %v881
        %v920 = vpop.f32.mrf.mxu0
        %v921 = vadd.f32 %v877, %v920
        %922 = vdwg.mxu0
        %v923 = vxor.u32 %v901, 2147483648
        %v924 = vmul.f32 %v923, 1.442695
        %v925 = vpow.pop %v924
        %v926 = vadd.f32 %v925, 1.0
        %v927 = vrcp.pop %v926
        %v928 = vmul.f32 %v926, %v927
        %v929 = vsub.f32 1.0, %v928
        %v930 = vmul.f32 %v927, %v929
        %v931 = vadd.f32 %v927, %v930
        %vm932 = vweird.f32 %v926
        %vm933 = vweird.f32 %v927
        %vm934 = vmor %vm932, %vm933
        %v935 = vsel %vm934, %v927, %v931
        %v936 = vand.u32 2147483647, %v926
        %vm937 = vcmp.eq.f32.partialorder %v936, 8.507059e+37
        %v938 = vand.u32 %v926, 2147483648
        %v939 = vor.u32 1.1754944e-38, %v938
        %v940 = vsel %vm937, %v939, %v935
        %v941 = vmul.f32 1.0, %v940
        %v942 = vmul.f32 %v901, %v941
        %v943 = vmul.f32 %v942, %v921
        %v944 = vld [vmem:[%s12] sm:$0xff]
        %v945 = vld [vmem:[%s12 + $0x8] sm:$0xff]
        %v946 = vld [vmem:[%s12 + $0x10] sm:$0xff]
        %v947 = vld [vmem:[%s12 + $0x18] sm:$0xff]
        %v948 = vld [vmem:[%s12 + $0x20] sm:$0xff]
        %v949 = vld [vmem:[%s12 + $0x28] sm:$0xff]
        %v950 = vld [vmem:[%s12 + $0x30] sm:$0xff]
        %v951 = vld [vmem:[%s12 + $0x38] sm:$0xff]
        %v952 = vld [vmem:[%s12 + $0x40] sm:$0xff]
        %v953 = vld [vmem:[%s12 + $0x48] sm:$0xff]
        %v954 = vld [vmem:[%s12 + $0x50] sm:$0xff]
        %v955 = vld [vmem:[%s12 + $0x58] sm:$0xff]
        %v956 = vld [vmem:[%s12 + $0x60] sm:$0xff]
        %v957 = vld [vmem:[%s12 + $0x68] sm:$0xff]
        %v958 = vld [vmem:[%s12 + $0x70] sm:$0xff]
        %v959 = vld [vmem:[%s12 + $0x78] sm:$0xff]
        %v960 = vld [vmem:[%s13] sm:$0x1]
        %v962 = vperm.slane %v960, 0
        %964 = vmatpush.msra.mxu0 %v959
        %965 = vmatpush.msra.mxu0 %v958
        %966 = vmatpush.msra.mxu0 %v957
        %967 = vmatpush.msra.mxu0 %v956
        %968 = vmatpush.msra.mxu0 %v955
        %969 = vmatpush.msra.mxu0 %v954
        %970 = vmatpush.msra.mxu0 %v953
        %971 = vmatpush.msra.mxu0 %v952
        %972 = vmatpush.msra.mxu0 %v951
        %973 = vmatpush.msra.mxu0 %v950
        %974 = vmatpush.msra.mxu0 %v949
        %975 = vmatpush.msra.mxu0 %v948
        %976 = vmatpush.msra.mxu0 %v947
        %977 = vmatpush.msra.mxu0 %v946
        %978 = vmatpush.msra.mxu0 %v945
        %979 = vmatpush.msra.mxu0 %v944
        %980 = vmatmul.f32.gmra.mxu0 %v943
        %v981 = vpop.f32.mrf.mxu0
        %v982 = vadd.f32 %v962, %v981
        %983 = vdwg.mxu0
        %985 = vrot.lane.b32.xlu0 %v982, 124
        %v986 = vpop.permute.xlu0 %985
        %v988 = vsub.f32 %v982, %v986
        %v989 = vxor.u32 %v988, 2147483648
        %v990 = vmul.f32 %v989, 1.442695
        %v991 = vpow.pop %v990
        %v992 = vadd.f32 %v991, 1.0
        %v993 = vrcp.pop %v992
        %v994 = vmul.f32 %v992, %v993
        %v995 = vsub.f32 1.0, %v994
        %v996 = vmul.f32 %v993, %v995
        %v997 = vadd.f32 %v993, %v996
        %vm998 = vweird.f32 %v992
        %vm999 = vweird.f32 %v993
        %vm1000 = vmor %vm998, %vm999
        %v1001 = vsel %vm1000, %v993, %v997
        %v1002 = vand.u32 2147483647, %v992
        %vm1003 = vcmp.eq.f32.partialorder %v1002, 8.507059e+37
        %v1004 = vand.u32 %v992, 2147483648
        %v1005 = vor.u32 1.1754944e-38, %v1004
        %v1006 = vsel %vm1003, %v1005, %v1001
        %v1007 = vmul.f32 1.0, %v1006
        %v1008 = vsub.f32 1.0, %v1007
        %v1009 = vadd.f32 %v1007, 1e-09
        %v1010 = vlog2.pop %v1009
        %v1011 = vmul.f32 %v1010, 0.6931472
        %v1012 = vmul.f32 %v1007, %v1011
        %v1013 = vadd.f32 %v1008, 1e-09
        %v1014 = vlog2.pop %v1013
        %v1015 = vmul.f32 %v1014, 0.6931472
        %v1016 = vmul.f32 %v1008, %v1015
        %v1017 = vadd.f32 %v1012, %v1016
        %v1018 = vsub.f32 0.0, %v1017
        %vm1019 = vcmask 31744
        %1020 = vst.msk [vmem:[%s766] sm:$0xff] %vm1019, %v1018
        %v1021 = vlaneseq
        %v1022 = vshrl.u32 %v1021, 7
        %v1023 = vlaneseq
        %v1024 = vand.u32 %v1023, 127
        %vm1025 = vcmp.le.s32.totalorder %v1024, %v1022
        %v1026 = vld [vmem:[#allocation13] sm:$0xff]
        %v1027 = vld [vmem:[#allocation13 + $0x8] sm:$0xff]
        %v1028 = vld [vmem:[#allocation13 + $0x10] sm:$0xff]
        %v1029 = vld [vmem:[#allocation13 + $0x18] sm:$0xff]
        %v1030 = vld [vmem:[%s16] sm:$0x1]
        %v1031 = vld [vmem:[#allocation11] sm:$0xff]
        %vm1032 = vcmask 64512
        %v1034 = vsel %vm1032, %v803, 0
        %v1037 = vsel %vm1032, %v833, 0
        %1039 = vmatpush.xpose.msra.mxu0 0.0
        %1040 = vmatpush.xpose.msra.mxu0 0.0
        %1041 = vmatpush.xpose.msra.mxu0 0.0
        %1042 = vmatpush.xpose.msra.mxu0 0.0
        %1043 = vmatpush.xpose.msra.mxu0 0.0
        %1044 = vmatpush.xpose.msra.mxu0 0.0
        %1045 = vmatpush.xpose.msra.mxu0 0.0
        %1046 = vmatpush.xpose.msra.mxu0 0.0
        %1047 = vmatpush.xpose.msra.mxu0 0.0
        %1048 = vmatpush.xpose.msra.mxu0 0.0
        %1049 = vmatpush.xpose.msra.mxu0 0.0
        %1050 = vmatpush.xpose.msra.mxu0 0.0
        %1051 = vmatpush.xpose.msra.mxu0 0.0
        %1052 = vmatpush.xpose.msra.mxu0 0.0
        %1053 = vmatpush.xpose.msra.mxu0 0.0
        %1054 = vmatpush.xpose.msra.mxu0 %v1037
        %1055 = vmatmul.f32.gmra.mxu0 %v1034
        %v1056 = vpop.f32.mrf.mxu0
        %v1057 = vadd.f32 0.0, %v1056
        %1058 = vdwg.mxu0
        %v1059 = vsel %vm1025, %v1057, -1e+09
        %v1060 = vsel %vm1032, %v1059, -inf
        %1061 = vmax.xlane.f32.xlu0 %v1060
        %v1062 = vpop.xlane.xlu0 %1061
        %v1063 = vsub.f32 %v1059, %v1062
        %v1064 = vmul.f32 %v1063, 1.442695
        %v1065 = vpow.pop %v1064
        %v1066 = vmul.f32 %v1065, %v1031
        %v1067 = vsel %vm1032, %v1065, 0.0
        %1068 = vadd.xlane.f32.xlu0 %v1067
        %v1069 = vpop.xlane.xlu0 %1068
        %v1070 = vsel %vm1032, %v1066, 0.0
        %1071 = vadd.xlane.f32.xlu0 %v1070
        %v1072 = vpop.xlane.xlu0 %1071
        %v1073 = vrcp.pop %v1069
        %v1074 = vmul.f32 %v1069, %v1073
        %v1075 = vsub.f32 1.0, %v1074
        %v1076 = vmul.f32 %v1073, %v1075
        %v1077 = vadd.f32 %v1073, %v1076
        %vm1078 = vweird.f32 %v1069
        %vm1079 = vweird.f32 %v1073
        %vm1080 = vmor %vm1078, %vm1079
        %v1081 = vsel %vm1080, %v1073, %v1077
        %v1082 = vand.u32 2147483647, %v1069
        %vm1083 = vcmp.eq.f32.partialorder %v1082, 8.507059e+37
        %v1084 = vand.u32 %v1069, 2147483648
        %v1085 = vor.u32 1.1754944e-38, %v1084
        %v1086 = vsel %vm1083, %v1085, %v1081
        %v1087 = vmul.f32 %v1008, %v1086
        %v1088 = vrcp.pop %v1072
        %v1089 = vmul.f32 %v1072, %v1088
        %v1090 = vsub.f32 1.0, %v1089
        %v1091 = vmul.f32 %v1088, %v1090
        %v1092 = vadd.f32 %v1088, %v1091
        %vm1093 = vweird.f32 %v1072
        %vm1094 = vweird.f32 %v1088
        %vm1095 = vmor %vm1093, %vm1094
        %v1096 = vsel %vm1095, %v1088, %v1092
        %v1097 = vand.u32 2147483647, %v1072
        %vm1098 = vcmp.eq.f32.partialorder %v1097, 8.507059e+37
        %v1099 = vand.u32 %v1072, 2147483648
        %v1100 = vor.u32 1.1754944e-38, %v1099
        %v1101 = vsel %vm1098, %v1100, %v1096
        %v1102 = vmul.f32 %v1007, %v1101
        %1104 = vset.pattern.permute.xlu0 0
        %1105 = vperm.xlu0 %1104, %v1087
        %v1106 = vpop.permute.xlu0 %1105
        %v1108 = vmul.f32 %v1065, %v1106
        %1110 = vset.pattern.permute.xlu0 0
        %1111 = vperm.xlu0 %1110, %v1102
        %v1112 = vpop.permute.xlu0 %1111
        %v1114 = vmul.f32 %v1066, %v1112
        %v1115 = vadd.f32 %v1108, %v1114
        %v1117 = vsel %vm1032, %v1115, 0
        %1119 = vmatpush.msra.mxu0 0.0
        %1120 = vmatpush.msra.mxu0 0.0
        %1121 = vmatpush.msra.mxu0 0.0
        %1122 = vmatpush.msra.mxu0 0.0
        %1123 = vmatpush.msra.mxu0 0.0
        %1124 = vmatpush.msra.mxu0 0.0
        %1125 = vmatpush.msra.mxu0 0.0
        %1126 = vmatpush.msra.mxu0 0.0
        %1127 = vmatpush.msra.mxu0 0.0
        %1128 = vmatpush.msra.mxu0 0.0
        %1129 = vmatpush.msra.mxu0 0.0
        %1130 = vmatpush.msra.mxu0 0.0
        %1131 = vmatpush.msra.mxu0 0.0
        %1132 = vmatpush.msra.mxu0 0.0
        %1133 = vmatpush.msra.mxu0 0.0
        %1134 = vmatpush.msra.mxu0 %v864
        %1135 = vmatmul.f32.gmra.mxu0 %v1117
        %v1136 = vpop.f32.mrf.mxu0
        %v1137 = vadd.f32 0.0, %v1136
        %1138 = vdwg.mxu0
        %v1140 = vsel %vm1032, %v1137, 0
        %1142 = vmatpush.msra.mxu0 0.0
        %1143 = vmatpush.msra.mxu0 0.0
        %1144 = vmatpush.msra.mxu0 0.0
        %1145 = vmatpush.msra.mxu0 0.0
        %1146 = vmatpush.msra.mxu0 0.0
        %1147 = vmatpush.msra.mxu0 0.0
        %1148 = vmatpush.msra.mxu0 0.0
        %1149 = vmatpush.msra.mxu0 0.0
        %1150 = vmatpush.msra.mxu0 0.0
        %1151 = vmatpush.msra.mxu0 0.0
        %1152 = vmatpush.msra.mxu0 0.0
        %1153 = vmatpush.msra.mxu0 0.0
        %1154 = vmatpush.msra.mxu0 0.0
        %1155 = vmatpush.msra.mxu0 0.0
        %1156 = vmatpush.msra.mxu0 0.0
        %1157 = vmatpush.msra.mxu0 %v1026
        %1158 = vmatmul.f32.gmra.mxu0 %v1140
        %v1159 = vpop.f32.mrf.mxu0
        %v1160 = vadd.f32 0.0, %v1159
        %1161 = vdwg.mxu0
        %v1163 = vperm.slane %v1030, 0
        %v1165 = vadd.f32 %v1163, %v1160
        %s1166 = scalar_lea.vmem [#allocation11], 8
        %v1167 = vld [vmem:[%s1166] sm:$0xff]
        %1168 = vrot.lane.b32.xlu0 %v803, 120
        %v1169 = vpop.permute.xlu0 %1168
        %1170 = vrot.lane.b32.xlu0 %v833, 120
        %v1171 = vpop.permute.xlu0 %1170
        %v1172 = vsel %vm1032, %v1169, 0
        %v1174 = vsel %vm1032, %v1171, 0
        %1176 = vmatpush.xpose.msra.mxu0 0.0
        %1177 = vmatpush.xpose.msra.mxu0 0.0
        %1178 = vmatpush.xpose.msra.mxu0 0.0
        %1179 = vmatpush.xpose.msra.mxu0 0.0
        %1180 = vmatpush.xpose.msra.mxu0 0.0
        %1181 = vmatpush.xpose.msra.mxu0 0.0
        %1182 = vmatpush.xpose.msra.mxu0 0.0
        %1183 = vmatpush.xpose.msra.mxu0 0.0
        %1184 = vmatpush.xpose.msra.mxu0 0.0
        %1185 = vmatpush.xpose.msra.mxu0 0.0
        %1186 = vmatpush.xpose.msra.mxu0 0.0
        %1187 = vmatpush.xpose.msra.mxu0 0.0
        %1188 = vmatpush.xpose.msra.mxu0 0.0
        %1189 = vmatpush.xpose.msra.mxu0 0.0
        %1190 = vmatpush.xpose.msra.mxu0 0.0
        %1191 = vmatpush.xpose.msra.mxu0 %v1174
        %1192 = vmatmul.f32.gmra.mxu0 %v1172
        %v1193 = vpop.f32.mrf.mxu0
        %v1194 = vadd.f32 0.0, %v1193
        %1195 = vdwg.mxu0
        %v1196 = vsel %vm1025, %v1194, -1e+09
        %v1197 = vsel %vm1032, %v1196, -inf
        %1198 = vmax.xlane.f32.xlu0 %v1197
        %v1199 = vpop.xlane.xlu0 %1198
        %v1200 = vsub.f32 %v1196, %v1199
        %v1201 = vmul.f32 %v1200, 1.442695
        %v1202 = vpow.pop %v1201
        %v1203 = vmul.f32 %v1202, %v1167
        %v1204 = vsel %vm1032, %v1202, 0.0
        %1205 = vadd.xlane.f32.xlu0 %v1204
        %v1206 = vpop.xlane.xlu0 %1205
        %v1207 = vsel %vm1032, %v1203, 0.0
        %1208 = vadd.xlane.f32.xlu0 %v1207
        %v1209 = vpop.xlane.xlu0 %1208
        %v1210 = vrcp.pop %v1206
        %v1211 = vmul.f32 %v1206, %v1210
        %v1212 = vsub.f32 1.0, %v1211
        %v1213 = vmul.f32 %v1210, %v1212
        %v1214 = vadd.f32 %v1210, %v1213
        %vm1215 = vweird.f32 %v1206
        %vm1216 = vweird.f32 %v1210
        %vm1217 = vmor %vm1215, %vm1216
        %v1218 = vsel %vm1217, %v1210, %v1214
        %v1219 = vand.u32 2147483647, %v1206
        %vm1220 = vcmp.eq.f32.partialorder %v1219, 8.507059e+37
        %v1221 = vand.u32 %v1206, 2147483648
        %v1222 = vor.u32 1.1754944e-38, %v1221
        %v1223 = vsel %vm1220, %v1222, %v1218
        %v1224 = vmul.f32 %v1008, %v1223
        %v1225 = vrcp.pop %v1209
        %v1226 = vmul.f32 %v1209, %v1225
        %v1227 = vsub.f32 1.0, %v1226
        %v1228 = vmul.f32 %v1225, %v1227
        %v1229 = vadd.f32 %v1225, %v1228
        %vm1230 = vweird.f32 %v1209
        %vm1231 = vweird.f32 %v1225
        %vm1232 = vmor %vm1230, %vm1231
        %v1233 = vsel %vm1232, %v1225, %v1229
        %v1234 = vand.u32 2147483647, %v1209
        %vm1235 = vcmp.eq.f32.partialorder %v1234, 8.507059e+37
        %v1236 = vand.u32 %v1209, 2147483648
        %v1237 = vor.u32 1.1754944e-38, %v1236
        %v1238 = vsel %vm1235, %v1237, %v1233
        %v1239 = vmul.f32 %v1007, %v1238
        %1241 = vset.pattern.permute.xlu0 1
        %1242 = vperm.xlu0 %1241, %v1224
        %v1243 = vpop.permute.xlu0 %1242
        %v1245 = vmul.f32 %v1202, %v1243
        %1247 = vset.pattern.permute.xlu0 1
        %1248 = vperm.xlu0 %1247, %v1239
        %v1249 = vpop.permute.xlu0 %1248
        %v1251 = vmul.f32 %v1203, %v1249
        %v1252 = vadd.f32 %v1245, %v1251
        %1254 = vrot.lane.b32.xlu0 %v864, 120
        %v1255 = vpop.permute.xlu0 %1254
        %v1258 = vsel %vm1032, %v1252, 0
        %1260 = vmatpush.msra.mxu0 0.0
        %1261 = vmatpush.msra.mxu0 0.0
        %1262 = vmatpush.msra.mxu0 0.0
        %1263 = vmatpush.msra.mxu0 0.0
        %1264 = vmatpush.msra.mxu0 0.0
        %1265 = vmatpush.msra.mxu0 0.0
        %1266 = vmatpush.msra.mxu0 0.0
        %1267 = vmatpush.msra.mxu0 0.0
        %1268 = vmatpush.msra.mxu0 0.0
        %1269 = vmatpush.msra.mxu0 0.0
        %1270 = vmatpush.msra.mxu0 0.0
        %1271 = vmatpush.msra.mxu0 0.0
        %1272 = vmatpush.msra.mxu0 0.0
        %1273 = vmatpush.msra.mxu0 0.0
        %1274 = vmatpush.msra.mxu0 0.0
        %1275 = vmatpush.msra.mxu0 %v1255
        %1276 = vmatmul.f32.gmra.mxu0 %v1258
        %v1277 = vpop.f32.mrf.mxu0
        %v1278 = vadd.f32 0.0, %v1277
        %1279 = vdwg.mxu0
        %v1281 = vsel %vm1032, %v1278, 0
        %1283 = vmatpush.msra.mxu0 0.0
        %1284 = vmatpush.msra.mxu0 0.0
        %1285 = vmatpush.msra.mxu0 0.0
        %1286 = vmatpush.msra.mxu0 0.0
        %1287 = vmatpush.msra.mxu0 0.0
        %1288 = vmatpush.msra.mxu0 0.0
        %1289 = vmatpush.msra.mxu0 0.0
        %1290 = vmatpush.msra.mxu0 0.0
        %1291 = vmatpush.msra.mxu0 0.0
        %1292 = vmatpush.msra.mxu0 0.0
        %1293 = vmatpush.msra.mxu0 0.0
        %1294 = vmatpush.msra.mxu0 0.0
        %1295 = vmatpush.msra.mxu0 0.0
        %1296 = vmatpush.msra.mxu0 0.0
        %1297 = vmatpush.msra.mxu0 0.0
        %1298 = vmatpush.msra.mxu0 %v1027
        %1299 = vmatmul.f32.gmra.mxu0 %v1281
        %v1300 = vpop.f32.mrf.mxu0
        %v1301 = vadd.f32 0.0, %v1300
        %1302 = vdwg.mxu0
        %v1303 = vadd.f32 %v1165, %v1301
        %s1304 = scalar_lea.vmem [#allocation11], 16
        %v1305 = vld [vmem:[%s1304] sm:$0xff]
        %1306 = vrot.lane.b32.xlu0 %v803, 112
        %v1307 = vpop.permute.xlu0 %1306
        %1308 = vrot.lane.b32.xlu0 %v833, 112
        %v1309 = vpop.permute.xlu0 %1308
        %v1310 = vsel %vm1032, %v1307, 0
        %v1312 = vsel %vm1032, %v1309, 0
        %1314 = vmatpush.xpose.msra.mxu0 0.0
        %1315 = vmatpush.xpose.msra.mxu0 0.0
        %1316 = vmatpush.xpose.msra.mxu0 0.0
        %1317 = vmatpush.xpose.msra.mxu0 0.0
        %1318 = vmatpush.xpose.msra.mxu0 0.0
        %1319 = vmatpush.xpose.msra.mxu0 0.0
        %1320 = vmatpush.xpose.msra.mxu0 0.0
        %1321 = vmatpush.xpose.msra.mxu0 0.0
        %1322 = vmatpush.xpose.msra.mxu0 0.0
        %1323 = vmatpush.xpose.msra.mxu0 0.0
        %1324 = vmatpush.xpose.msra.mxu0 0.0
        %1325 = vmatpush.xpose.msra.mxu0 0.0
        %1326 = vmatpush.xpose.msra.mxu0 0.0
        %1327 = vmatpush.xpose.msra.mxu0 0.0
        %1328 = vmatpush.xpose.msra.mxu0 0.0
        %1329 = vmatpush.xpose.msra.mxu0 %v1312
        %1330 = vmatmul.f32.gmra.mxu0 %v1310
        %v1331 = vpop.f32.mrf.mxu0
        %v1332 = vadd.f32 0.0, %v1331
        %1333 = vdwg.mxu0
        %v1334 = vsel %vm1025, %v1332, -1e+09
        %v1335 = vsel %vm1032, %v1334, -inf
        %1336 = vmax.xlane.f32.xlu0 %v1335
        %v1337 = vpop.xlane.xlu0 %1336
        %v1338 = vsub.f32 %v1334, %v1337
        %v1339 = vmul.f32 %v1338, 1.442695
        %v1340 = vpow.pop %v1339
        %v1341 = vmul.f32 %v1340, %v1305
        %v1342 = vsel %vm1032, %v1340, 0.0
        %1343 = vadd.xlane.f32.xlu0 %v1342
        %v1344 = vpop.xlane.xlu0 %1343
        %v1345 = vsel %vm1032, %v1341, 0.0
        %1346 = vadd.xlane.f32.xlu0 %v1345
        %v1347 = vpop.xlane.xlu0 %1346
        %v1348 = vrcp.pop %v1344
        %v1349 = vmul.f32 %v1344, %v1348
        %v1350 = vsub.f32 1.0, %v1349
        %v1351 = vmul.f32 %v1348, %v1350
        %v1352 = vadd.f32 %v1348, %v1351
        %vm1353 = vweird.f32 %v1344
        %vm1354 = vweird.f32 %v1348
        %vm1355 = vmor %vm1353, %vm1354
        %v1356 = vsel %vm1355, %v1348, %v1352
        %v1357 = vand.u32 2147483647, %v1344
        %vm1358 = vcmp.eq.f32.partialorder %v1357, 8.507059e+37
        %v1359 = vand.u32 %v1344, 2147483648
        %v1360 = vor.u32 1.1754944e-38, %v1359
        %v1361 = vsel %vm1358, %v1360, %v1356
        %v1362 = vmul.f32 %v1008, %v1361
        %v1363 = vrcp.pop %v1347
        %v1364 = vmul.f32 %v1347, %v1363
        %v1365 = vsub.f32 1.0, %v1364
        %v1366 = vmul.f32 %v1363, %v1365
        %v1367 = vadd.f32 %v1363, %v1366
        %vm1368 = vweird.f32 %v1347
        %vm1369 = vweird.f32 %v1363
        %vm1370 = vmor %vm1368, %vm1369
        %v1371 = vsel %vm1370, %v1363, %v1367
        %v1372 = vand.u32 2147483647, %v1347
        %vm1373 = vcmp.eq.f32.partialorder %v1372, 8.507059e+37
        %v1374 = vand.u32 %v1347, 2147483648
        %v1375 = vor.u32 1.1754944e-38, %v1374
        %v1376 = vsel %vm1373, %v1375, %v1371
        %v1377 = vmul.f32 %v1007, %v1376
        %1379 = vset.pattern.permute.xlu0 2
        %1380 = vperm.xlu0 %1379, %v1362
        %v1381 = vpop.permute.xlu0 %1380
        %v1383 = vmul.f32 %v1340, %v1381
        %1385 = vset.pattern.permute.xlu0 2
        %1386 = vperm.xlu0 %1385, %v1377
        %v1387 = vpop.permute.xlu0 %1386
        %v1389 = vmul.f32 %v1341, %v1387
        %v1390 = vadd.f32 %v1383, %v1389
        %1391 = vrot.lane.b32.xlu0 %v864, 112
        %v1392 = vpop.permute.xlu0 %1391
        %v1395 = vsel %vm1032, %v1390, 0
        %1397 = vmatpush.msra.mxu0 0.0
        %1398 = vmatpush.msra.mxu0 0.0
        %1399 = vmatpush.msra.mxu0 0.0
        %1400 = vmatpush.msra.mxu0 0.0
        %1401 = vmatpush.msra.mxu0 0.0
        %1402 = vmatpush.msra.mxu0 0.0
        %1403 = vmatpush.msra.mxu0 0.0
        %1404 = vmatpush.msra.mxu0 0.0
        %1405 = vmatpush.msra.mxu0 0.0
        %1406 = vmatpush.msra.mxu0 0.0
        %1407 = vmatpush.msra.mxu0 0.0
        %1408 = vmatpush.msra.mxu0 0.0
        %1409 = vmatpush.msra.mxu0 0.0
        %1410 = vmatpush.msra.mxu0 0.0
        %1411 = vmatpush.msra.mxu0 0.0
        %1412 = vmatpush.msra.mxu0 %v1392
        %1413 = vmatmul.f32.gmra.mxu0 %v1395
        %v1414 = vpop.f32.mrf.mxu0
        %v1415 = vadd.f32 0.0, %v1414
        %1416 = vdwg.mxu0
        %v1418 = vsel %vm1032, %v1415, 0
        %1420 = vmatpush.msra.mxu0 0.0
        %1421 = vmatpush.msra.mxu0 0.0
        %1422 = vmatpush.msra.mxu0 0.0
        %1423 = vmatpush.msra.mxu0 0.0
        %1424 = vmatpush.msra.mxu0 0.0
        %1425 = vmatpush.msra.mxu0 0.0
        %1426 = vmatpush.msra.mxu0 0.0
        %1427 = vmatpush.msra.mxu0 0.0
        %1428 = vmatpush.msra.mxu0 0.0
        %1429 = vmatpush.msra.mxu0 0.0
        %1430 = vmatpush.msra.mxu0 0.0
        %1431 = vmatpush.msra.mxu0 0.0
        %1432 = vmatpush.msra.mxu0 0.0
        %1433 = vmatpush.msra.mxu0 0.0
        %1434 = vmatpush.msra.mxu0 0.0
        %1435 = vmatpush.msra.mxu0 %v1028
        %1436 = vmatmul.f32.gmra.mxu0 %v1418
        %v1437 = vpop.f32.mrf.mxu0
        %v1438 = vadd.f32 0.0, %v1437
        %1439 = vdwg.mxu0
        %v1440 = vadd.f32 %v1303, %v1438
        %s1441 = scalar_lea.vmem [#allocation11], 24
        %v1442 = vld [vmem:[%s1441] sm:$0xff]
        %1443 = vrot.lane.b32.xlu0 %v803, 104
        %v1444 = vpop.permute.xlu0 %1443
        %1445 = vrot.lane.b32.xlu0 %v833, 104
        %v1446 = vpop.permute.xlu0 %1445
        %v1447 = vsel %vm1032, %v1444, 0
        %v1449 = vsel %vm1032, %v1446, 0
        %1451 = vmatpush.xpose.msra.mxu0 0.0
        %1452 = vmatpush.xpose.msra.mxu0 0.0
        %1453 = vmatpush.xpose.msra.mxu0 0.0
        %1454 = vmatpush.xpose.msra.mxu0 0.0
        %1455 = vmatpush.xpose.msra.mxu0 0.0
        %1456 = vmatpush.xpose.msra.mxu0 0.0
        %1457 = vmatpush.xpose.msra.mxu0 0.0
        %1458 = vmatpush.xpose.msra.mxu0 0.0
        %1459 = vmatpush.xpose.msra.mxu0 0.0
        %1460 = vmatpush.xpose.msra.mxu0 0.0
        %1461 = vmatpush.xpose.msra.mxu0 0.0
        %1462 = vmatpush.xpose.msra.mxu0 0.0
        %1463 = vmatpush.xpose.msra.mxu0 0.0
        %1464 = vmatpush.xpose.msra.mxu0 0.0
        %1465 = vmatpush.xpose.msra.mxu0 0.0
        %1466 = vmatpush.xpose.msra.mxu0 %v1449
        %1467 = vmatmul.f32.gmra.mxu0 %v1447
        %v1468 = vpop.f32.mrf.mxu0
        %v1469 = vadd.f32 0.0, %v1468
        %1470 = vdwg.mxu0
        %v1471 = vsel %vm1025, %v1469, -1e+09
        %v1472 = vsel %vm1032, %v1471, -inf
        %1473 = vmax.xlane.f32.xlu0 %v1472
        %v1474 = vpop.xlane.xlu0 %1473
        %v1475 = vsub.f32 %v1471, %v1474
        %v1476 = vmul.f32 %v1475, 1.442695
        %v1477 = vpow.pop %v1476
        %v1478 = vmul.f32 %v1477, %v1442
        %v1479 = vsel %vm1032, %v1477, 0.0
        %1480 = vadd.xlane.f32.xlu0 %v1479
        %v1481 = vpop.xlane.xlu0 %1480
        %v1482 = vsel %vm1032, %v1478, 0.0
        %1483 = vadd.xlane.f32.xlu0 %v1482
        %v1484 = vpop.xlane.xlu0 %1483
        %v1485 = vrcp.pop %v1481
        %v1486 = vmul.f32 %v1481, %v1485
        %v1487 = vsub.f32 1.0, %v1486
        %v1488 = vmul.f32 %v1485, %v1487
        %v1489 = vadd.f32 %v1485, %v1488
        %vm1490 = vweird.f32 %v1481
        %vm1491 = vweird.f32 %v1485
        %vm1492 = vmor %vm1490, %vm1491
        %v1493 = vsel %vm1492, %v1485, %v1489
        %v1494 = vand.u32 2147483647, %v1481
        %vm1495 = vcmp.eq.f32.partialorder %v1494, 8.507059e+37
        %v1496 = vand.u32 %v1481, 2147483648
        %v1497 = vor.u32 1.1754944e-38, %v1496
        %v1498 = vsel %vm1495, %v1497, %v1493
        %v1499 = vmul.f32 %v1008, %v1498
        %v1500 = vrcp.pop %v1484
        %v1501 = vmul.f32 %v1484, %v1500
        %v1502 = vsub.f32 1.0, %v1501
        %v1503 = vmul.f32 %v1500, %v1502
        %v1504 = vadd.f32 %v1500, %v1503
        %vm1505 = vweird.f32 %v1484
        %vm1506 = vweird.f32 %v1500
        %vm1507 = vmor %vm1505, %vm1506
        %v1508 = vsel %vm1507, %v1500, %v1504
        %v1509 = vand.u32 2147483647, %v1484
        %vm1510 = vcmp.eq.f32.partialorder %v1509, 8.507059e+37
        %v1511 = vand.u32 %v1484, 2147483648
        %v1512 = vor.u32 1.1754944e-38, %v1511
        %v1513 = vsel %vm1510, %v1512, %v1508
        %v1514 = vmul.f32 %v1007, %v1513
        %1516 = vset.pattern.permute.xlu0 3
        %1517 = vperm.xlu0 %1516, %v1499
        %v1518 = vpop.permute.xlu0 %1517
        %v1520 = vmul.f32 %v1477, %v1518
        %1522 = vset.pattern.permute.xlu0 3
        %1523 = vperm.xlu0 %1522, %v1514
        %v1524 = vpop.permute.xlu0 %1523
        %v1526 = vmul.f32 %v1478, %v1524
        %v1527 = vadd.f32 %v1520, %v1526
        %1528 = vrot.lane.b32.xlu0 %v864, 104
        %v1529 = vpop.permute.xlu0 %1528
        %v1532 = vsel %vm1032, %v1527, 0
        %1534 = vmatpush.msra.mxu0 0.0
        %1535 = vmatpush.msra.mxu0 0.0
        %1536 = vmatpush.msra.mxu0 0.0
        %1537 = vmatpush.msra.mxu0 0.0
        %1538 = vmatpush.msra.mxu0 0.0
        %1539 = vmatpush.msra.mxu0 0.0
        %1540 = vmatpush.msra.mxu0 0.0
        %1541 = vmatpush.msra.mxu0 0.0
        %1542 = vmatpush.msra.mxu0 0.0
        %1543 = vmatpush.msra.mxu0 0.0
        %1544 = vmatpush.msra.mxu0 0.0
        %1545 = vmatpush.msra.mxu0 0.0
        %1546 = vmatpush.msra.mxu0 0.0
        %1547 = vmatpush.msra.mxu0 0.0
        %1548 = vmatpush.msra.mxu0 0.0
        %1549 = vmatpush.msra.mxu0 %v1529
        %1550 = vmatmul.f32.gmra.mxu0 %v1532
        %v1551 = vpop.f32.mrf.mxu0
        %v1552 = vadd.f32 0.0, %v1551
        %1553 = vdwg.mxu0
        %v1555 = vsel %vm1032, %v1552, 0
        %1557 = vmatpush.msra.mxu0 0.0
        %1558 = vmatpush.msra.mxu0 0.0
        %1559 = vmatpush.msra.mxu0 0.0
        %1560 = vmatpush.msra.mxu0 0.0
        %1561 = vmatpush.msra.mxu0 0.0
        %1562 = vmatpush.msra.mxu0 0.0
        %1563 = vmatpush.msra.mxu0 0.0
        %1564 = vmatpush.msra.mxu0 0.0
        %1565 = vmatpush.msra.mxu0 0.0
        %1566 = vmatpush.msra.mxu0 0.0
        %1567 = vmatpush.msra.mxu0 0.0
        %1568 = vmatpush.msra.mxu0 0.0
        %1569 = vmatpush.msra.mxu0 0.0
        %1570 = vmatpush.msra.mxu0 0.0
        %1571 = vmatpush.msra.mxu0 0.0
        %1572 = vmatpush.msra.mxu0 %v1029
        %1573 = vmatmul.f32.gmra.mxu0 %v1555
        %v1574 = vpop.f32.mrf.mxu0
        %v1575 = vadd.f32 0.0, %v1574
        %1576 = vdwg.mxu0
        %v1577 = vadd.f32 %v1440, %v1575
        %1578 = vst.msk [vmem:[%s756] sm:$0xff] %vm779, %v1577
        %s1579 = sand.u32 %s428, 1
        %s1580 = scalar_lea.sflag [#allocation4], %s1579
        %s1581 = sand.u32 %s428, 1
        %s1582 = smul.addr %s1581, 8
        %s1583 = scalar_lea.vmem [#allocation14], %s1582
        %p1584 = scmp.lt.s32.totalorder %s43, 1
        %s1585 = scalar_select %p1584, %s43, 1
        %s1586 = smul.addr %s1585, 8
        %s1587 = scalar_lea.vmem %s18, %s1586
        // Predicated region
        $region117: #{tpu_custom_call.1} parent=87 // pred_check
          %p1588 = pneg %p438
        $region118: #{tpu_custom_call.1} parent=87 // pred_check_branch
          %1590 = sbr.rel (%p1588) target = $region120
        $region119: #{tpu_custom_call.1} parent=87 // pred_region
          %1592 = vsyncadd %s1580, 0
          %s1593 = smul.addr %s43, 8
          %s1594 = scalar_lea.hbm %s17, %s1593
          %s1596 = sshll.u32 %s1583, 4
          %s1597 = int_to_ptr.vmem [resolvable:$true] %s1596
          %s1598 = sshll.u32 %s1594, 4
          %s1599 = int_to_ptr.hbm [resolvable:$true] %s1598
          %1601 = dma.vmem_to_hbm [thread:$0]  %s1597, 128, %s1599, %s1580
        $region120: #{tpu_custom_call.1} parent=87 // pred_fallthru
          _
        // Predicated region
        $region121: #{tpu_custom_call.1} parent=87 // pred_check
          %p1602 = pneg %p464
        $region122: #{tpu_custom_call.1} parent=87 // pred_check_branch
          %1604 = sbr.rel (%p1602) target = $region124
        $region123: #{tpu_custom_call.1} parent=87 // pred_region
          _
        $region124: #{tpu_custom_call.1} parent=87 // pred_fallthru
          _
      $region88: #{tpu_custom_call.1} parent=5 // pred_fallthru
        _
      %p1605 = scmp.le.s32.totalorder 2, %s38
      // Predicated region
      $region125: #{tpu_custom_call.1} parent=5 // pred_check
        %p1606 = pneg %p1605
      $region126: #{tpu_custom_call.1} parent=5 // pred_check_branch
        %1608 = sbr.rel (%p1606) target = $region128
      $region127: #{tpu_custom_call.1} parent=5 // pred_region
        %s1609 = ssub.s32 %s38, 2
        // Predicated region
        $region129: #{tpu_custom_call.1} parent=127 // pred_check
          %p1610 = pneg %p444
        $region130: #{tpu_custom_call.1} parent=127 // pred_check_branch
          %1612 = sbr.rel (%p1610) target = $region132
        $region131: #{tpu_custom_call.1} parent=127 // pred_region
          %s1613 = sand.u32 %s429, 1
          %s1614 = scalar_lea.sflag [#allocation4], %s1613
          %s1615 = sand.u32 %s429, 1
          %s1616 = smul.addr %s1615, 8
          %s1617 = scalar_lea.vmem [#allocation14], %s1616
          %1619 = dma.done %s1614, 128
        $region132: #{tpu_custom_call.1} parent=127 // pred_fallthru
          _
        // Predicated region
        $region133: #{tpu_custom_call.1} parent=127 // pred_check
          %p1620 = pneg %p470
        $region134: #{tpu_custom_call.1} parent=127 // pred_check_branch
          %1622 = sbr.rel (%p1620) target = $region136
        $region135: #{tpu_custom_call.1} parent=127 // pred_region
          %p1623 = scmp.lt.s32.totalorder %s44, 1
          %s1624 = scalar_select %p1623, %s44, 1
          %s1625 = smul.addr %s1624, 8
          %s1626 = scalar_lea.vmem %s18, %s1625
        $region136: #{tpu_custom_call.1} parent=127 // pred_fallthru
          _
      $region128: #{tpu_custom_call.1} parent=5 // pred_fallthru
        _
    $region6: #{tpu_custom_call.1} parent=1 // loop_footer
      %s42 = sadd.s32 1, %s38
    $region7: #{tpu_custom_call.1} parent=1 // loop_footer_branch
      %37 = sbr.rel target = $region3
    $region8: #{tpu_custom_call.1} parent=1 // loop_exit
      _
    %1627 = vsyncpa [#allocation3], 1
    %s1628 = scalar_lea.sflag [#allocation3], 1
    %1629 = vsyncpa %s1628, 1
    %1630 = vsyncpa [#allocation6], 1
    %s1631 = scalar_lea.sflag [#allocation6], 1
    %1632 = vsyncpa %s1631, 1
    %1633 = vsyncpa [#allocation9], 1
    %s1634 = scalar_lea.sflag [#allocation9], 1
    %1635 = vsyncpa %s1634, 1
    %1636 = vsyncpa [#allocation12], 1
    %1637 = vsyncpa [#allocation4], 1
    %s1638 = scalar_lea.sflag [#allocation4], 1
    %1639 = vsyncpa %s1638, 1

</llo_original>
